<compile_context>
chip_gen: v7x
topology: tpu7x:2x2x1
jax: 0.10.0
libtpu: 0.0.40
codegen_flags: <defaults>
</compile_context>

<pallas_src>
import jax
import jax.numpy as jnp
from jax.experimental import pallas as pl
from jax.experimental.pallas import tpu as pltpu


# ----------------------------------------------------------------------------
# Pallas kernel: whole batch in one invocation, everything register-resident
# ----------------------------------------------------------------------------
def _rcnn_kernel(x_ref, wih_ref, whh_ref, bias_ref, wcg_ref, out_ref):
    """RCNN forward.

    x_ref    : (B, S, H)       input sequences (batch_first)
    wih_ref  : (L, H, H)       RNN input->hidden weights, (in, out) layout
    whh_ref  : (L, H, H)       RNN hidden->hidden weights, (in, out) layout
    bias_ref : (L, 1, H)       b_ih + b_hh
    wcg_ref  : (K*H, 2H)       fused [cnn | gate] conv weights, (tap*in, out)
    out_ref  : (B, S, H)       output
    """
    B, S, H = x_ref.shape
    L = wih_ref.shape[0]
    KH = wcg_ref.shape[0]
    K = KH // H
    pad = (K - 1) // 2

    # Flatten to batch-major rows (b*S + t).  Merging leading dims keeps the
    # lane dim intact, so this reshape is layout-free.
    x_bm = x_ref[...].reshape(B * S, H)

    # ---------------- multi-layer tanh RNN (batch_first, h0 = 0) -------------
    # Both batch chains share every per-timestep (B,H)x(H,H) matmul.
    inp_tm = None                                   # time-major (S*B, H), rows t*B + b
    for l in range(L):
        w_ih = wih_ref[l]                           # (H, H)
        w_hh = whh_ref[l]                           # (H, H)
        b = bias_ref[l]                             # (1, H)

        if l == 0:
            # One (B*S,H)x(H,H) MXU push for all timesteps of all batch rows.
            xw = jnp.dot(x_bm, w_ih, preferred_element_type=jnp.float32) + b
            # Per-timestep (B,H) slices gathered from batch-major rows; static
            # slices + sublane concat, off the dependent chain.
            xts = [
                jnp.concatenate(
                    [xw[bb * S + t: bb * S + t + 1, :] for bb in range(B)],
                    axis=0)
                for t in range(S)
            ]
        else:
            # Previous layer output is already time-major -> contiguous slices.
            xw = jnp.dot(inp_tm, w_ih, preferred_element_type=jnp.float32) + b
            xts = [xw[t * B:(t + 1) * B, :] for t in range(S)]

        # Fully unrolled recurrence; h stays in vregs.
        h = jnp.zeros((B, H), jnp.float32)
        hs = []
        for t in range(S):
            h = jnp.tanh(xts[t]
                         + jnp.dot(h, w_hh, preferred_element_type=jnp.float32))
            hs.append(h)
        inp_tm = jnp.concatenate(hs, axis=0)        # (S*B, H), stays in vregs

    # -------- fused GateCNN: y = conv(r) * sigmoid(gate_conv(r)) -------------
    # Time-major layout: a shift of `s` timesteps is a shift of s*B rows, with
    # zero row-blocks at the sequence edges (per-batch 'same' padding).
    r = inp_tm
    taps = []
    for j in range(K):
        shift = j - pad
        if shift < 0:
            tap = jnp.concatenate(
                [jnp.zeros((-shift * B, H), jnp.float32),
                 r[:(S + shift) * B, :]], axis=0)
        elif shift > 0:
            tap = jnp.concatenate(
                [r[shift * B:, :],
                 jnp.zeros((shift * B, H), jnp.float32)], axis=0)
        else:
            tap = r
        taps.append(tap)
    conv_in = jnp.concatenate(taps, axis=1)                     # (S*B, K*H)
    acc = jnp.dot(conv_in, wcg_ref[...],
                  preferred_element_type=jnp.float32)           # (S*B, 2H)

    y = acc[:, :H] * jax.nn.sigmoid(acc[:, H:])                 # (S*B, H)

    # ---- store batch-major: gather each batch element's S time rows ---------
    for bb in range(B):
        out_ref[bb] = jnp.concatenate(
            [y[t * B + bb: t * B + bb + 1, :] for t in range(S)],
            axis=0).astype(out_ref.dtype)


# ----------------------------------------------------------------------------
# One-time parameter prep (hoisted out of the per-call path)
# ----------------------------------------------------------------------------
def prepare_params(w_ih, w_hh, b_ih, b_hh, w_cnn, w_gate):
    """PyTorch-layout params -> kernel-layout params.  Call once."""
    K, H, _ = w_cnn.shape
    wih_t = jnp.transpose(w_ih, (0, 2, 1)).astype(jnp.float32)    # (L, in, out)
    whh_t = jnp.transpose(w_hh, (0, 2, 1)).astype(jnp.float32)    # (L, in, out)
    bias = (b_ih + b_hh).astype(jnp.float32)                      # (L, 1, H)
    # Fuse cnn/gate along out-channels, transpose to (tap, in, out), flatten
    # the (tap, in) contraction dims -> (K*H, 2H).
    wcg = jnp.transpose(jnp.concatenate([w_cnn, w_gate], axis=1), (0, 2, 1))
    wcg = wcg.reshape(K * H, 2 * H).astype(jnp.float32)
    return wih_t, whh_t, bias, wcg


# ----------------------------------------------------------------------------
# Jitted forward: just the pallas_call
# ----------------------------------------------------------------------------
@jax.jit
def rcnn_forward(x, wih_t, whh_t, bias, wcg):
    B, S, H = x.shape
    L = wih_t.shape[0]
    KH, H2 = wcg.shape
    return pl.pallas_call(
        _rcnn_kernel,
        out_shape=jax.ShapeDtypeStruct((B, S, H), jnp.float32),
        grid=(1,),
        in_specs=[
            pl.BlockSpec((B, S, H), lambda i: (0, 0, 0)),      # x
            pl.BlockSpec((L, H, H), lambda i: (0, 0, 0)),      # W_ih^T
            pl.BlockSpec((L, H, H), lambda i: (0, 0, 0)),      # W_hh^T
            pl.BlockSpec((L, 1, H), lambda i: (0, 0, 0)),      # fused bias
            pl.BlockSpec((KH, H2), lambda i: (0, 0)),          # fused conv+gate
        ],
        out_specs=pl.BlockSpec((B, S, H), lambda i: (0, 0, 0)),
        compiler_params=pltpu.CompilerParams(
            dimension_semantics=("arbitrary",)),
    )(x, wih_t, whh_t, bias, wcg)


# ----------------------------------------------------------------------------
# Pure-JAX reference (mirrors the PyTorch forward)
# ----------------------------------------------------------------------------
def rcnn_reference(x, w_ih, w_hh, b_ih, b_hh, w_cnn, w_gate):
    B, S, H = x.shape
    L = w_ih.shape[0]
    K = w_cnn.shape[0]
    pad = (K - 1) // 2

    inp = x
    for l in range(L):
        h = jnp.zeros((B, H), jnp.float32)
        outs = []
        for t in range(S):
            h = jnp.tanh(inp[:, t, :] @ w_ih[l].T + b_ih[l, 0]
                         + h @ w_hh[l].T + b_hh[l, 0])
            outs.append(h)
        inp = jnp.stack(outs, axis=1)
    r = inp

    def conv(v, w):
        vp = jnp.pad(v, ((0, 0), (pad, pad), (0, 0)))
        acc = jnp.zeros((B, S, H), jnp.float32)
        for j in range(K):
            acc = acc + jnp.einsum('bsi,oi->bso', vp[:, j:j + S, :], w[j])
        return acc

    return conv(r, w_cnn) * jax.nn.sigmoid(conv(r, w_gate))


# ----------------------------------------------------------------------------
# Main
# ----------------------------------------------------------------------------
if __name__ == "__main__":
    # config = {'hidden_size': 32, 'kernel_size': 3, 'hidden_layer_num': 2}
    B, S, H = 2, 8, 32
    L, K = 2, 3

    key = jax.random.PRNGKey(0)
    ks = jax.random.split(key, 7)
    scale = 1.0 / jnp.sqrt(H)

    x = jax.random.normal(ks[0], (B, S, H), jnp.float32)
    w_ih = jax.random.uniform(ks[1], (L, H, H), jnp.float32, -scale, scale)
    w_hh = jax.random.uniform(ks[2], (L, H, H), jnp.float32, -scale, scale)
    b_ih = jax.random.uniform(ks[3], (L, 1, H), jnp.float32, -scale, scale)
    b_hh = jax.random.uniform(ks[4], (L, 1, H), jnp.float32, -scale, scale)
    # Conv1d weights stored as (K, out_channels, in_channels) = weight[:, :, k]
    w_cnn = jax.random.uniform(ks[5], (K, H, H), jnp.float32, -scale, scale)
    w_gate = jax.random.uniform(ks[6], (K, H, H), jnp.float32, -scale, scale)

    # One-time parameter prep, outside the jitted forward.
    wih_t, whh_t, bias, wcg = prepare_params(w_ih, w_hh, b_ih, b_hh,
                                             w_cnn, w_gate)
    wih_t, whh_t, bias, wcg = jax.block_until_ready(
        (wih_t, whh_t, bias, wcg))

    out = rcnn_forward(x, wih_t, whh_t, bias, wcg)
    out = jax.block_until_ready(out)

    ref = rcnn_reference(x, w_ih, w_hh, b_ih, b_hh, w_cnn, w_gate)
    assert out.shape == (B, S, H)
    assert jnp.allclose(out, ref, atol=1e-3, rtol=1e-3), (
        f"max abs diff {jnp.max(jnp.abs(out - ref))}")

    print("KERNEL_OK")
</pallas_src>

<mosaic_0001>
module attributes {stable_mosaic.version = 11 : i64} {
  func.func @_rcnn_kernel(%arg0: i32, %arg1: memref<2x8x32xf32, #tpu.memory_space<vmem>>, %arg2: memref<2x32x32xf32, #tpu.memory_space<vmem>>, %arg3: memref<2x32x32xf32, #tpu.memory_space<vmem>>, %arg4: memref<2x1x32xf32, #tpu.memory_space<vmem>>, %arg5: memref<96x64xf32, #tpu.memory_space<vmem>>, %arg6: memref<2x8x32xf32, #tpu.memory_space<vmem>>) attributes {dimension_semantics = [#tpu.dimension_semantics<arbitrary>], iteration_bounds = array<i64: 1>, scalar_prefetch = 0 : i64, scratch_operands = 0 : i64, tpu.core_type = #tpu.core_type<tc>, window_params = [{pipeline_mode = #tpu.pipeline_mode<synchronous>, transform_indices = @transform_0, window_bounds = array<i64: 2, 8, 32>}, {pipeline_mode = #tpu.pipeline_mode<synchronous>, transform_indices = @transform_1, window_bounds = array<i64: 2, 32, 32>}, {pipeline_mode = #tpu.pipeline_mode<synchronous>, transform_indices = @transform_2, window_bounds = array<i64: 2, 32, 32>}, {pipeline_mode = #tpu.pipeline_mode<synchronous>, transform_indices = @transform_3, window_bounds = array<i64: 2, 1, 32>}, {pipeline_mode = #tpu.pipeline_mode<synchronous>, transform_indices = @transform_4, window_bounds = array<i64: 96, 64>}, {pipeline_mode = #tpu.pipeline_mode<synchronous>, transform_indices = @transform_5, window_bounds = array<i64: 2, 8, 32>}]} {
    %c0 = arith.constant 0 : index
    %c0_0 = arith.constant 0 : index
    %c0_1 = arith.constant 0 : index
    %0 = vector.load %arg1[%c0, %c0_0, %c0_1] : memref<2x8x32xf32, #tpu.memory_space<vmem>>, vector<2x8x32xf32>
    %1 = vector.shape_cast %0 : vector<2x8x32xf32> to vector<16x32xf32>
    %c0_2 = arith.constant 0 : index
    %c0_3 = arith.constant 0 : index
    %c0_4 = arith.constant 0 : index
    %2 = vector.load %arg2[%c0_2, %c0_3, %c0_4] : memref<2x32x32xf32, #tpu.memory_space<vmem>>, vector<1x32x32xf32>
    %3 = vector.shape_cast %2 : vector<1x32x32xf32> to vector<32x32xf32>
    %c0_5 = arith.constant 0 : index
    %c0_6 = arith.constant 0 : index
    %c0_7 = arith.constant 0 : index
    %4 = vector.load %arg3[%c0_5, %c0_6, %c0_7] : memref<2x32x32xf32, #tpu.memory_space<vmem>>, vector<1x32x32xf32>
    %5 = vector.shape_cast %4 : vector<1x32x32xf32> to vector<32x32xf32>
    %c0_8 = arith.constant 0 : index
    %c0_9 = arith.constant 0 : index
    %c0_10 = arith.constant 0 : index
    %6 = vector.load %arg4[%c0_8, %c0_9, %c0_10] : memref<2x1x32xf32, #tpu.memory_space<vmem>>, vector<1x1x32xf32>
    %7 = vector.shape_cast %6 : vector<1x1x32xf32> to vector<1x32xf32>
    %cst = arith.constant dense<0.000000e+00> : vector<16x32xf32>
    %8 = tpu.matmul %1, %3, %cst {dimension_numbers = #tpu.dot_dimension_numbers<[1], [0], [0], [1], [0, 0, 1, 1], [], []>} : vector<16x32xf32>, vector<32x32xf32>, vector<16x32xf32> -> vector<16x32xf32>
    %9 = vector.broadcast %7 : vector<1x32xf32> to vector<16x32xf32>
    %10 = arith.addf %8, %9 : vector<16x32xf32>
    %11 = vector.extract_strided_slice %10 {offsets = [0, 0], sizes = [1, 32], strides = [1, 1]} : vector<16x32xf32> to vector<1x32xf32>
    %12 = vector.extract_strided_slice %10 {offsets = [8, 0], sizes = [1, 32], strides = [1, 1]} : vector<16x32xf32> to vector<1x32xf32>
    %13 = tpu.concatenate %11, %12 in 0 : vector<1x32xf32>, vector<1x32xf32> -> vector<2x32xf32>
    %14 = vector.extract_strided_slice %10 {offsets = [1, 0], sizes = [1, 32], strides = [1, 1]} : vector<16x32xf32> to vector<1x32xf32>
    %15 = vector.extract_strided_slice %10 {offsets = [9, 0], sizes = [1, 32], strides = [1, 1]} : vector<16x32xf32> to vector<1x32xf32>
    %16 = tpu.concatenate %14, %15 in 0 : vector<1x32xf32>, vector<1x32xf32> -> vector<2x32xf32>
    %17 = vector.extract_strided_slice %10 {offsets = [2, 0], sizes = [1, 32], strides = [1, 1]} : vector<16x32xf32> to vector<1x32xf32>
    %18 = vector.extract_strided_slice %10 {offsets = [10, 0], sizes = [1, 32], strides = [1, 1]} : vector<16x32xf32> to vector<1x32xf32>
    %19 = tpu.concatenate %17, %18 in 0 : vector<1x32xf32>, vector<1x32xf32> -> vector<2x32xf32>
    %20 = vector.extract_strided_slice %10 {offsets = [3, 0], sizes = [1, 32], strides = [1, 1]} : vector<16x32xf32> to vector<1x32xf32>
    %21 = vector.extract_strided_slice %10 {offsets = [11, 0], sizes = [1, 32], strides = [1, 1]} : vector<16x32xf32> to vector<1x32xf32>
    %22 = tpu.concatenate %20, %21 in 0 : vector<1x32xf32>, vector<1x32xf32> -> vector<2x32xf32>
    %23 = vector.extract_strided_slice %10 {offsets = [4, 0], sizes = [1, 32], strides = [1, 1]} : vector<16x32xf32> to vector<1x32xf32>
    %24 = vector.extract_strided_slice %10 {offsets = [12, 0], sizes = [1, 32], strides = [1, 1]} : vector<16x32xf32> to vector<1x32xf32>
    %25 = tpu.concatenate %23, %24 in 0 : vector<1x32xf32>, vector<1x32xf32> -> vector<2x32xf32>
    %26 = vector.extract_strided_slice %10 {offsets = [5, 0], sizes = [1, 32], strides = [1, 1]} : vector<16x32xf32> to vector<1x32xf32>
    %27 = vector.extract_strided_slice %10 {offsets = [13, 0], sizes = [1, 32], strides = [1, 1]} : vector<16x32xf32> to vector<1x32xf32>
    %28 = tpu.concatenate %26, %27 in 0 : vector<1x32xf32>, vector<1x32xf32> -> vector<2x32xf32>
    %29 = vector.extract_strided_slice %10 {offsets = [6, 0], sizes = [1, 32], strides = [1, 1]} : vector<16x32xf32> to vector<1x32xf32>
    %30 = vector.extract_strided_slice %10 {offsets = [14, 0], sizes = [1, 32], strides = [1, 1]} : vector<16x32xf32> to vector<1x32xf32>
    %31 = tpu.concatenate %29, %30 in 0 : vector<1x32xf32>, vector<1x32xf32> -> vector<2x32xf32>
    %32 = vector.extract_strided_slice %10 {offsets = [7, 0], sizes = [1, 32], strides = [1, 1]} : vector<16x32xf32> to vector<1x32xf32>
    %33 = vector.extract_strided_slice %10 {offsets = [15, 0], sizes = [1, 32], strides = [1, 1]} : vector<16x32xf32> to vector<1x32xf32>
    %34 = tpu.concatenate %32, %33 in 0 : vector<1x32xf32>, vector<1x32xf32> -> vector<2x32xf32>
    %cst_11 = arith.constant 0.000000e+00 : f32
    %35 = vector.broadcast %cst_11 : f32 to vector<2x32xf32>
    %cst_12 = arith.constant dense<0.000000e+00> : vector<2x32xf32>
    %36 = tpu.matmul %35, %5, %cst_12 {dimension_numbers = #tpu.dot_dimension_numbers<[1], [0], [0], [1], [0, 0, 1, 1], [], []>} : vector<2x32xf32>, vector<32x32xf32>, vector<2x32xf32> -> vector<2x32xf32>
    %37 = arith.addf %13, %36 : vector<2x32xf32>
    %38 = math.tanh %37 : vector<2x32xf32>
    %cst_13 = arith.constant dense<0.000000e+00> : vector<2x32xf32>
    %39 = tpu.matmul %38, %5, %cst_13 {dimension_numbers = #tpu.dot_dimension_numbers<[1], [0], [0], [1], [0, 0, 1, 1], [], []>} : vector<2x32xf32>, vector<32x32xf32>, vector<2x32xf32> -> vector<2x32xf32>
    %40 = arith.addf %16, %39 : vector<2x32xf32>
    %41 = math.tanh %40 : vector<2x32xf32>
    %cst_14 = arith.constant dense<0.000000e+00> : vector<2x32xf32>
    %42 = tpu.matmul %41, %5, %cst_14 {dimension_numbers = #tpu.dot_dimension_numbers<[1], [0], [0], [1], [0, 0, 1, 1], [], []>} : vector<2x32xf32>, vector<32x32xf32>, vector<2x32xf32> -> vector<2x32xf32>
    %43 = arith.addf %19, %42 : vector<2x32xf32>
    %44 = math.tanh %43 : vector<2x32xf32>
    %cst_15 = arith.constant dense<0.000000e+00> : vector<2x32xf32>
    %45 = tpu.matmul %44, %5, %cst_15 {dimension_numbers = #tpu.dot_dimension_numbers<[1], [0], [0], [1], [0, 0, 1, 1], [], []>} : vector<2x32xf32>, vector<32x32xf32>, vector<2x32xf32> -> vector<2x32xf32>
    %46 = arith.addf %22, %45 : vector<2x32xf32>
    %47 = math.tanh %46 : vector<2x32xf32>
    %cst_16 = arith.constant dense<0.000000e+00> : vector<2x32xf32>
    %48 = tpu.matmul %47, %5, %cst_16 {dimension_numbers = #tpu.dot_dimension_numbers<[1], [0], [0], [1], [0, 0, 1, 1], [], []>} : vector<2x32xf32>, vector<32x32xf32>, vector<2x32xf32> -> vector<2x32xf32>
    %49 = arith.addf %25, %48 : vector<2x32xf32>
    %50 = math.tanh %49 : vector<2x32xf32>
    %cst_17 = arith.constant dense<0.000000e+00> : vector<2x32xf32>
    %51 = tpu.matmul %50, %5, %cst_17 {dimension_numbers = #tpu.dot_dimension_numbers<[1], [0], [0], [1], [0, 0, 1, 1], [], []>} : vector<2x32xf32>, vector<32x32xf32>, vector<2x32xf32> -> vector<2x32xf32>
    %52 = arith.addf %28, %51 : vector<2x32xf32>
    %53 = math.tanh %52 : vector<2x32xf32>
    %cst_18 = arith.constant dense<0.000000e+00> : vector<2x32xf32>
    %54 = tpu.matmul %53, %5, %cst_18 {dimension_numbers = #tpu.dot_dimension_numbers<[1], [0], [0], [1], [0, 0, 1, 1], [], []>} : vector<2x32xf32>, vector<32x32xf32>, vector<2x32xf32> -> vector<2x32xf32>
    %55 = arith.addf %31, %54 : vector<2x32xf32>
    %56 = math.tanh %55 : vector<2x32xf32>
    %cst_19 = arith.constant dense<0.000000e+00> : vector<2x32xf32>
    %57 = tpu.matmul %56, %5, %cst_19 {dimension_numbers = #tpu.dot_dimension_numbers<[1], [0], [0], [1], [0, 0, 1, 1], [], []>} : vector<2x32xf32>, vector<32x32xf32>, vector<2x32xf32> -> vector<2x32xf32>
    %58 = arith.addf %34, %57 : vector<2x32xf32>
    %59 = math.tanh %58 : vector<2x32xf32>
    %60 = tpu.concatenate %38, %41, %44, %47, %50, %53, %56, %59 in 0 : vector<2x32xf32>, vector<2x32xf32>, vector<2x32xf32>, vector<2x32xf32>, vector<2x32xf32>, vector<2x32xf32>, vector<2x32xf32>, vector<2x32xf32> -> vector<16x32xf32>
    %c1 = arith.constant 1 : index
    %c0_20 = arith.constant 0 : index
    %c0_21 = arith.constant 0 : index
    %61 = vector.load %arg2[%c1, %c0_20, %c0_21] : memref<2x32x32xf32, #tpu.memory_space<vmem>>, vector<1x32x32xf32>
    %62 = vector.shape_cast %61 : vector<1x32x32xf32> to vector<32x32xf32>
    %c1_22 = arith.constant 1 : index
    %c0_23 = arith.constant 0 : index
    %c0_24 = arith.constant 0 : index
    %63 = vector.load %arg3[%c1_22, %c0_23, %c0_24] : memref<2x32x32xf32, #tpu.memory_space<vmem>>, vector<1x32x32xf32>
    %64 = vector.shape_cast %63 : vector<1x32x32xf32> to vector<32x32xf32>
    %c1_25 = arith.constant 1 : index
    %c0_26 = arith.constant 0 : index
    %c0_27 = arith.constant 0 : index
    %65 = vector.load %arg4[%c1_25, %c0_26, %c0_27] : memref<2x1x32xf32, #tpu.memory_space<vmem>>, vector<1x1x32xf32>
    %66 = vector.shape_cast %65 : vector<1x1x32xf32> to vector<1x32xf32>
    %cst_28 = arith.constant dense<0.000000e+00> : vector<16x32xf32>
    %67 = tpu.matmul %60, %62, %cst_28 {dimension_numbers = #tpu.dot_dimension_numbers<[1], [0], [0], [1], [0, 0, 1, 1], [], []>} : vector<16x32xf32>, vector<32x32xf32>, vector<16x32xf32> -> vector<16x32xf32>
    %68 = vector.broadcast %66 : vector<1x32xf32> to vector<16x32xf32>
    %69 = arith.addf %67, %68 : vector<16x32xf32>
    %70 = vector.extract_strided_slice %69 {offsets = [0, 0], sizes = [2, 32], strides = [1, 1]} : vector<16x32xf32> to vector<2x32xf32>
    %71 = vector.extract_strided_slice %69 {offsets = [2, 0], sizes = [2, 32], strides = [1, 1]} : vector<16x32xf32> to vector<2x32xf32>
    %72 = vector.extract_strided_slice %69 {offsets = [4, 0], sizes = [2, 32], strides = [1, 1]} : vector<16x32xf32> to vector<2x32xf32>
    %73 = vector.extract_strided_slice %69 {offsets = [6, 0], sizes = [2, 32], strides = [1, 1]} : vector<16x32xf32> to vector<2x32xf32>
    %74 = vector.extract_strided_slice %69 {offsets = [8, 0], sizes = [2, 32], strides = [1, 1]} : vector<16x32xf32> to vector<2x32xf32>
    %75 = vector.extract_strided_slice %69 {offsets = [10, 0], sizes = [2, 32], strides = [1, 1]} : vector<16x32xf32> to vector<2x32xf32>
    %76 = vector.extract_strided_slice %69 {offsets = [12, 0], sizes = [2, 32], strides = [1, 1]} : vector<16x32xf32> to vector<2x32xf32>
    %77 = vector.extract_strided_slice %69 {offsets = [14, 0], sizes = [2, 32], strides = [1, 1]} : vector<16x32xf32> to vector<2x32xf32>
    %cst_29 = arith.constant 0.000000e+00 : f32
    %78 = vector.broadcast %cst_29 : f32 to vector<2x32xf32>
    %cst_30 = arith.constant dense<0.000000e+00> : vector<2x32xf32>
    %79 = tpu.matmul %78, %64, %cst_30 {dimension_numbers = #tpu.dot_dimension_numbers<[1], [0], [0], [1], [0, 0, 1, 1], [], []>} : vector<2x32xf32>, vector<32x32xf32>, vector<2x32xf32> -> vector<2x32xf32>
    %80 = arith.addf %70, %79 : vector<2x32xf32>
    %81 = math.tanh %80 : vector<2x32xf32>
    %cst_31 = arith.constant dense<0.000000e+00> : vector<2x32xf32>
    %82 = tpu.matmul %81, %64, %cst_31 {dimension_numbers = #tpu.dot_dimension_numbers<[1], [0], [0], [1], [0, 0, 1, 1], [], []>} : vector<2x32xf32>, vector<32x32xf32>, vector<2x32xf32> -> vector<2x32xf32>
    %83 = arith.addf %71, %82 : vector<2x32xf32>
    %84 = math.tanh %83 : vector<2x32xf32>
    %cst_32 = arith.constant dense<0.000000e+00> : vector<2x32xf32>
    %85 = tpu.matmul %84, %64, %cst_32 {dimension_numbers = #tpu.dot_dimension_numbers<[1], [0], [0], [1], [0, 0, 1, 1], [], []>} : vector<2x32xf32>, vector<32x32xf32>, vector<2x32xf32> -> vector<2x32xf32>
    %86 = arith.addf %72, %85 : vector<2x32xf32>
    %87 = math.tanh %86 : vector<2x32xf32>
    %cst_33 = arith.constant dense<0.000000e+00> : vector<2x32xf32>
    %88 = tpu.matmul %87, %64, %cst_33 {dimension_numbers = #tpu.dot_dimension_numbers<[1], [0], [0], [1], [0, 0, 1, 1], [], []>} : vector<2x32xf32>, vector<32x32xf32>, vector<2x32xf32> -> vector<2x32xf32>
    %89 = arith.addf %73, %88 : vector<2x32xf32>
    %90 = math.tanh %89 : vector<2x32xf32>
    %cst_34 = arith.constant dense<0.000000e+00> : vector<2x32xf32>
    %91 = tpu.matmul %90, %64, %cst_34 {dimension_numbers = #tpu.dot_dimension_numbers<[1], [0], [0], [1], [0, 0, 1, 1], [], []>} : vector<2x32xf32>, vector<32x32xf32>, vector<2x32xf32> -> vector<2x32xf32>
    %92 = arith.addf %74, %91 : vector<2x32xf32>
    %93 = math.tanh %92 : vector<2x32xf32>
    %cst_35 = arith.constant dense<0.000000e+00> : vector<2x32xf32>
    %94 = tpu.matmul %93, %64, %cst_35 {dimension_numbers = #tpu.dot_dimension_numbers<[1], [0], [0], [1], [0, 0, 1, 1], [], []>} : vector<2x32xf32>, vector<32x32xf32>, vector<2x32xf32> -> vector<2x32xf32>
    %95 = arith.addf %75, %94 : vector<2x32xf32>
    %96 = math.tanh %95 : vector<2x32xf32>
    %cst_36 = arith.constant dense<0.000000e+00> : vector<2x32xf32>
    %97 = tpu.matmul %96, %64, %cst_36 {dimension_numbers = #tpu.dot_dimension_numbers<[1], [0], [0], [1], [0, 0, 1, 1], [], []>} : vector<2x32xf32>, vector<32x32xf32>, vector<2x32xf32> -> vector<2x32xf32>
    %98 = arith.addf %76, %97 : vector<2x32xf32>
    %99 = math.tanh %98 : vector<2x32xf32>
    %cst_37 = arith.constant dense<0.000000e+00> : vector<2x32xf32>
    %100 = tpu.matmul %99, %64, %cst_37 {dimension_numbers = #tpu.dot_dimension_numbers<[1], [0], [0], [1], [0, 0, 1, 1], [], []>} : vector<2x32xf32>, vector<32x32xf32>, vector<2x32xf32> -> vector<2x32xf32>
    %101 = arith.addf %77, %100 : vector<2x32xf32>
    %102 = math.tanh %101 : vector<2x32xf32>
    %103 = tpu.concatenate %81, %84, %87, %90, %93, %96, %99, %102 in 0 : vector<2x32xf32>, vector<2x32xf32>, vector<2x32xf32>, vector<2x32xf32>, vector<2x32xf32>, vector<2x32xf32>, vector<2x32xf32>, vector<2x32xf32> -> vector<16x32xf32>
    %cst_38 = arith.constant 0.000000e+00 : f32
    %104 = vector.broadcast %cst_38 : f32 to vector<2x32xf32>
    %105 = vector.extract_strided_slice %103 {offsets = [0, 0], sizes = [14, 32], strides = [1, 1]} : vector<16x32xf32> to vector<14x32xf32>
    %106 = tpu.concatenate %104, %105 in 0 : vector<2x32xf32>, vector<14x32xf32> -> vector<16x32xf32>
    %107 = vector.extract_strided_slice %103 {offsets = [2, 0], sizes = [14, 32], strides = [1, 1]} : vector<16x32xf32> to vector<14x32xf32>
    %cst_39 = arith.constant 0.000000e+00 : f32
    %108 = vector.broadcast %cst_39 : f32 to vector<2x32xf32>
    %109 = tpu.concatenate %107, %108 in 0 : vector<14x32xf32>, vector<2x32xf32> -> vector<16x32xf32>
    %110 = tpu.concatenate %106, %103, %109 in 1 : vector<16x32xf32>, vector<16x32xf32>, vector<16x32xf32> -> vector<16x96xf32>
    %c0_40 = arith.constant 0 : index
    %c0_41 = arith.constant 0 : index
    %111 = vector.load %arg5[%c0_40, %c0_41] : memref<96x64xf32, #tpu.memory_space<vmem>>, vector<96x64xf32>
    %cst_42 = arith.constant dense<0.000000e+00> : vector<16x64xf32>
    %112 = tpu.matmul %110, %111, %cst_42 {dimension_numbers = #tpu.dot_dimension_numbers<[1], [0], [0], [1], [0, 0, 1, 1], [], []>} : vector<16x96xf32>, vector<96x64xf32>, vector<16x64xf32> -> vector<16x64xf32>
    %113 = vector.extract_strided_slice %112 {offsets = [0, 0], sizes = [16, 32], strides = [1, 1]} : vector<16x64xf32> to vector<16x32xf32>
    %114 = vector.extract_strided_slice %112 {offsets = [0, 32], sizes = [16, 32], strides = [1, 1]} : vector<16x64xf32> to vector<16x32xf32>
    %115 = arith.negf %114 : vector<16x32xf32>
    %116 = math.exp %115 : vector<16x32xf32>
    %cst_43 = arith.constant 1.000000e+00 : f32
    %117 = vector.broadcast %cst_43 : f32 to vector<16x32xf32>
    %118 = arith.addf %117, %116 : vector<16x32xf32>
    %119 = arith.divf %117, %118 : vector<16x32xf32>
    %120 = arith.mulf %113, %119 : vector<16x32xf32>
    %121 = vector.extract_strided_slice %120 {offsets = [0, 0], sizes = [1, 32], strides = [1, 1]} : vector<16x32xf32> to vector<1x32xf32>
    %122 = vector.extract_strided_slice %120 {offsets = [2, 0], sizes = [1, 32], strides = [1, 1]} : vector<16x32xf32> to vector<1x32xf32>
    %123 = vector.extract_strided_slice %120 {offsets = [4, 0], sizes = [1, 32], strides = [1, 1]} : vector<16x32xf32> to vector<1x32xf32>
    %124 = vector.extract_strided_slice %120 {offsets = [6, 0], sizes = [1, 32], strides = [1, 1]} : vector<16x32xf32> to vector<1x32xf32>
    %125 = vector.extract_strided_slice %120 {offsets = [8, 0], sizes = [1, 32], strides = [1, 1]} : vector<16x32xf32> to vector<1x32xf32>
    %126 = vector.extract_strided_slice %120 {offsets = [10, 0], sizes = [1, 32], strides = [1, 1]} : vector<16x32xf32> to vector<1x32xf32>
    %127 = vector.extract_strided_slice %120 {offsets = [12, 0], sizes = [1, 32], strides = [1, 1]} : vector<16x32xf32> to vector<1x32xf32>
    %128 = vector.extract_strided_slice %120 {offsets = [14, 0], sizes = [1, 32], strides = [1, 1]} : vector<16x32xf32> to vector<1x32xf32>
    %129 = tpu.concatenate %121, %122, %123, %124, %125, %126, %127, %128 in 0 : vector<1x32xf32>, vector<1x32xf32>, vector<1x32xf32>, vector<1x32xf32>, vector<1x32xf32>, vector<1x32xf32>, vector<1x32xf32>, vector<1x32xf32> -> vector<8x32xf32>
    %c0_44 = arith.constant 0 : index
    %c0_45 = arith.constant 0 : index
    %c0_46 = arith.constant 0 : index
    %130 = vector.load %arg6[%c0_44, %c0_45, %c0_46] : memref<2x8x32xf32, #tpu.memory_space<vmem>>, vector<1x8x32xf32>
    %131 = vector.shape_cast %130 : vector<1x8x32xf32> to vector<8x32xf32>
    %132 = vector.shape_cast %129 : vector<8x32xf32> to vector<1x8x32xf32>
    tpu.vector_store %arg6[%c0_44, %c0_45, %c0_46], %132 {strides = array<i32>} : memref<2x8x32xf32, #tpu.memory_space<vmem>>, vector<1x8x32xf32>,
    %133 = vector.extract_strided_slice %120 {offsets = [1, 0], sizes = [1, 32], strides = [1, 1]} : vector<16x32xf32> to vector<1x32xf32>
    %134 = vector.extract_strided_slice %120 {offsets = [3, 0], sizes = [1, 32], strides = [1, 1]} : vector<16x32xf32> to vector<1x32xf32>
    %135 = vector.extract_strided_slice %120 {offsets = [5, 0], sizes = [1, 32], strides = [1, 1]} : vector<16x32xf32> to vector<1x32xf32>
    %136 = vector.extract_strided_slice %120 {offsets = [7, 0], sizes = [1, 32], strides = [1, 1]} : vector<16x32xf32> to vector<1x32xf32>
    %137 = vector.extract_strided_slice %120 {offsets = [9, 0], sizes = [1, 32], strides = [1, 1]} : vector<16x32xf32> to vector<1x32xf32>
    %138 = vector.extract_strided_slice %120 {offsets = [11, 0], sizes = [1, 32], strides = [1, 1]} : vector<16x32xf32> to vector<1x32xf32>
    %139 = vector.extract_strided_slice %120 {offsets = [13, 0], sizes = [1, 32], strides = [1, 1]} : vector<16x32xf32> to vector<1x32xf32>
    %140 = vector.extract_strided_slice %120 {offsets = [15, 0], sizes = [1, 32], strides = [1, 1]} : vector<16x32xf32> to vector<1x32xf32>
    %141 = tpu.concatenate %133, %134, %135, %136, %137, %138, %139, %140 in 0 : vector<1x32xf32>, vector<1x32xf32>, vector<1x32xf32>, vector<1x32xf32>, vector<1x32xf32>, vector<1x32xf32>, vector<1x32xf32>, vector<1x32xf32> -> vector<8x32xf32>
    %c1_47 = arith.constant 1 : index
    %c0_48 = arith.constant 0 : index
    %c0_49 = arith.constant 0 : index
    %142 = vector.load %arg6[%c1_47, %c0_48, %c0_49] : memref<2x8x32xf32, #tpu.memory_space<vmem>>, vector<1x8x32xf32>
    %143 = vector.shape_cast %142 : vector<1x8x32xf32> to vector<8x32xf32>
    %144 = vector.shape_cast %141 : vector<8x32xf32> to vector<1x8x32xf32>
    tpu.vector_store %arg6[%c1_47, %c0_48, %c0_49], %144 {strides = array<i32>} : memref<2x8x32xf32, #tpu.memory_space<vmem>>, vector<1x8x32xf32>,
    return
  }
  func.func @transform_0(%arg0: i32) -> (i32, i32, i32) {
    %c0_i32 = arith.constant 0 : i32
    %c0_i32_0 = arith.constant 0 : i32
    %c0_i32_1 = arith.constant 0 : i32
    %c0_i32_2 = arith.constant 0 : i32
    return %c0_i32, %c0_i32_0, %c0_i32_1 : i32, i32, i32
  }
  func.func @transform_1(%arg0: i32) -> (i32, i32, i32) {
    %c0_i32 = arith.constant 0 : i32
    %c0_i32_0 = arith.constant 0 : i32
    %c0_i32_1 = arith.constant 0 : i32
    %c0_i32_2 = arith.constant 0 : i32
    return %c0_i32, %c0_i32_0, %c0_i32_1 : i32, i32, i32
  }
  func.func @transform_2(%arg0: i32) -> (i32, i32, i32) {
    %c0_i32 = arith.constant 0 : i32
    %c0_i32_0 = arith.constant 0 : i32
    %c0_i32_1 = arith.constant 0 : i32
    %c0_i32_2 = arith.constant 0 : i32
    return %c0_i32, %c0_i32_0, %c0_i32_1 : i32, i32, i32
  }
  func.func @transform_3(%arg0: i32) -> (i32, i32, i32) {
    %c0_i32 = arith.constant 0 : i32
    %c0_i32_0 = arith.constant 0 : i32
    %c0_i32_1 = arith.constant 0 : i32
    %c0_i32_2 = arith.constant 0 : i32
    return %c0_i32, %c0_i32_0, %c0_i32_1 : i32, i32, i32
  }
  func.func @transform_4(%arg0: i32) -> (i32, i32) {
    %c0_i32 = arith.constant 0 : i32
    %c0_i32_0 = arith.constant 0 : i32
    %c0_i32_1 = arith.constant 0 : i32
    return %c0_i32, %c0_i32_0 : i32, i32
  }
  func.func @transform_5(%arg0: i32) -> (i32, i32, i32) {
    %c0_i32 = arith.constant 0 : i32
    %c0_i32_0 = arith.constant 0 : i32
    %c0_i32_1 = arith.constant 0 : i32
    %c0_i32_2 = arith.constant 0 : i32
    return %c0_i32, %c0_i32_0, %c0_i32_1 : i32, i32, i32
  }
}

</mosaic_0001>

<llo_original>
// kernel: rcnn_forward.1
$region0: #{rcnn_forward.1}
  #allocation0 [shape = 'u32[]', space=smem, size = 0x4, offset = 0x4, fixed_abs, tag = 'smem constant byte address 0x4 - core index']
  #allocation1 [shape = 'u32[144,128]{1,0:T(1,128)}', space=vmem, size = 0x12000, scoped, tag = 'internal scratch']
  %s0 = inlined_call_operand.vmem [shape: f32[2,8,32], index: 0, kind: input, shape index: {}]
  %s1 = inlined_call_operand.vmem [shape: f32[2,32,32], index: 1, kind: input, shape index: {}]
  %s2 = inlined_call_operand.vmem [shape: f32[2,32,32], index: 2, kind: input, shape index: {}]
  %s3 = inlined_call_operand.vmem [shape: f32[2,1,32], index: 3, kind: input, shape index: {}]
  %s4 = inlined_call_operand.vmem [shape: f32[96,64], index: 4, kind: input, shape index: {}]
  %s5 = inlined_call_operand.hbm [shape: f32[2,8,32], index: 5, kind: output, shape index: {}]
  %s6 = sld [smem:[#allocation0]]
  $region30: #{rcnn_forward.1} parent=0
    _
  %s8 = ssub.s32 1, %s6
  %s9 = scalar_select 0, %s8, %s6
  $region1: #{rcnn_forward.1} parent=0
    #allocation2 [shape = 'u8[8192]{0}', space=vmem, size = 0x2000, scoped, tag = 'output window, operand 0, single buffered']
    #allocation3 [shape = 's32[1]{0}', space=sflag, size = 0x4, scoped, tag = 'scoped memory for rcnn_forward.1']
    %10 = vsyncpa [#allocation3], 0
    // Predicated region
    $region2: #{rcnn_forward.1} parent=1 // pred_check
      _
    $region3: #{rcnn_forward.1} parent=1 // pred_check_branch
      %12 = sbr.rel (0) target = $region5
    $region4: #{rcnn_forward.1} parent=1 // pred_region
      _
    $region5: #{rcnn_forward.1} parent=1 // pred_fallthru
      _
    // Predicated region
    $region6: #{rcnn_forward.1} parent=1 // pred_check
      _
    $region7: #{rcnn_forward.1} parent=1 // pred_check_branch
      %14 = sbr.rel (0) target = $region9
    $region8: #{rcnn_forward.1} parent=1 // pred_region
      _
    $region9: #{rcnn_forward.1} parent=1 // pred_fallthru
      _
    // Predicated region
    $region10: #{rcnn_forward.1} parent=1 // pred_check
      _
    $region11: #{rcnn_forward.1} parent=1 // pred_check_branch
      %16 = sbr.rel (0) target = $region13
    $region12: #{rcnn_forward.1} parent=1 // pred_region
      _
    $region13: #{rcnn_forward.1} parent=1 // pred_fallthru
      _
    // Predicated region
    $region14: #{rcnn_forward.1} parent=1 // pred_check
      _
    $region15: #{rcnn_forward.1} parent=1 // pred_check_branch
      %18 = sbr.rel (0) target = $region17
    $region16: #{rcnn_forward.1} parent=1 // pred_region
      _
    $region17: #{rcnn_forward.1} parent=1 // pred_fallthru
      _
    // Predicated region
    $region18: #{rcnn_forward.1} parent=1 // pred_check
      _
    $region19: #{rcnn_forward.1} parent=1 // pred_check_branch
      %20 = sbr.rel (0) target = $region21
    $region20: #{rcnn_forward.1} parent=1 // pred_region
      _
    $region21: #{rcnn_forward.1} parent=1 // pred_fallthru
      _
    %v21 = vld [vmem:[%s0] sm:$0xff]
    %v22 = vld [vmem:[%s0 + $0x8] sm:$0xff]
    %v23 = vld [vmem:[%s1] sm:$0xff]
    %v24 = vld [vmem:[%s1 + $0x8] sm:$0xff]
    %v25 = vld [vmem:[%s1 + $0x10] sm:$0xff]
    %v26 = vld [vmem:[%s1 + $0x18] sm:$0xff]
    %v27 = vld [vmem:[%s2] sm:$0xff]
    %v28 = vld [vmem:[%s2 + $0x8] sm:$0xff]
    %v29 = vld [vmem:[%s2 + $0x10] sm:$0xff]
    %v30 = vld [vmem:[%s2 + $0x18] sm:$0xff]
    %v31 = vld [vmem:[%s3] sm:$0x1]
    %v33 = vlaneseq
    %v34 = vshrl.u32 %v33, 7
    %v35 = vsub.s32 0, %v34
    %v36 = vrot.slane %v31, %v35
    %vm38 = vcmask 261120
    %v40 = vsel %vm38, %v21, 0
    %v43 = vsel %vm38, %v22, 0
    %45 = vmatprep.subr.mxu0 0.0
    %46 = vmatpush1.msra.mxu0 %v23
    %47 = vmatprep.subr.mxu0 0.0
    %48 = vmatpush1.msra.mxu0 %v24
    %49 = vmatprep.subr.mxu0 0.0
    %50 = vmatpush1.msra.mxu0 %v25
    %51 = vmatprep.subr.mxu0 0.0
    %52 = vmatpush1.msra.mxu0 %v26
    %53 = vmatprep.subr.mxu0 0.0
    %54 = vmatpush1.msra.mxu0 0.0
    %55 = vmatprep.subr.mxu0 0.0
    %56 = vmatpush1.msra.mxu0 0.0
    %57 = vmatprep.subr.mxu0 0.0
    %58 = vmatpush1.msra.mxu0 0.0
    %59 = vmatprep.subr.mxu0 0.0
    %60 = vmatpush1.msra.mxu0 0.0
    %61 = vmatprep.subr.mxu0 0.0
    %62 = vmatpush1.msra.mxu0 0.0
    %63 = vmatprep.subr.mxu0 0.0
    %64 = vmatpush1.msra.mxu0 0.0
    %65 = vmatprep.subr.mxu0 0.0
    %66 = vmatpush1.msra.mxu0 0.0
    %67 = vmatprep.subr.mxu0 0.0
    %68 = vmatpush1.msra.mxu0 0.0
    %69 = vmatprep.subr.mxu0 0.0
    %70 = vmatpush1.msra.mxu0 0.0
    %71 = vmatprep.subr.mxu0 0.0
    %72 = vmatpush1.msra.mxu0 0.0
    %73 = vmatprep.subr.mxu0 0.0
    %74 = vmatpush1.msra.mxu0 0.0
    %75 = vmatprep.subr.mxu0 0.0
    %76 = vmatpush1.msra.mxu0 0.0
    %77 = vmatprep.subr.mxu0 0.0
    %78 = vmatpush1.msra.mxu0 0.0
    %79 = vmatprep.subr.mxu0 0.0
    %80 = vmatpush1.msra.mxu0 0.0
    %81 = vmatprep.subr.mxu0 0.0
    %82 = vmatpush1.msra.mxu0 0.0
    %83 = vmatprep.subr.mxu0 0.0
    %84 = vmatpush1.msra.mxu0 0.0
    %85 = vmatprep.subr.mxu0 0.0
    %86 = vmatpush1.msra.mxu0 0.0
    %87 = vmatprep.subr.mxu0 0.0
    %88 = vmatpush1.msra.mxu0 0.0
    %89 = vmatprep.subr.mxu0 0.0
    %90 = vmatpush1.msra.mxu0 0.0
    %91 = vmatprep.subr.mxu0 0.0
    %92 = vmatpush1.msra.mxu0 0.0
    %93 = vmatprep.subr.mxu0 0.0
    %94 = vmatpush1.msra.mxu0 0.0
    %95 = vmatprep.subr.mxu0 0.0
    %96 = vmatpush1.msra.mxu0 0.0
    %97 = vmatprep.subr.mxu0 0.0
    %98 = vmatpush1.msra.mxu0 0.0
    %99 = vmatprep.subr.mxu0 0.0
    %100 = vmatpush1.msra.mxu0 0.0
    %101 = vmatprep.subr.mxu0 0.0
    %102 = vmatpush1.msra.mxu0 0.0
    %103 = vmatprep.subr.mxu0 0.0
    %104 = vmatpush1.msra.mxu0 0.0
    %105 = vmatprep.subr.mxu0 0.0
    %106 = vmatpush1.msra.mxu0 0.0
    %107 = vmatprep.subr.mxu0 0.0
    %108 = vmatpush1.msra.mxu0 0.0
    %109 = vmatprep.mubr.f32.mxu0 0.0
    %110 = vmatmul.mubr.f32.gmra.mrb[0].mxu0 %v40
    %v111 = vpop.f32.mrb[0].mxu0
    %v112 = vadd.f32 %v36, %v111
    %v113 = vpop.f32.mrb[0].mxu0
    %114 = vmatprep.mubr.f32.mxu0 0.0
    %115 = vmatmul.mubr.f32.gmra.mrb[0].mxu0 %v43
    %v116 = vpop.f32.mrb[0].mxu0
    %v117 = vadd.f32 %v36, %v116
    %v118 = vpop.f32.mrb[0].mxu0
    %119 = vdwg.mxu0
    %v121 = vrot.slane %v117, 7
    %vm123 = vcmask 1040384
    %v124 = vsel %vm123, %v112, %v121
    %v126 = vrot.slane %v112, 1
    %v128 = vsel %vm123, %v126, %v117
    %v129 = vrot.slane %v112, 2
    %v131 = vrot.slane %v117, 1
    %v133 = vsel %vm123, %v129, %v131
    %v134 = vrot.slane %v112, 3
    %v136 = vrot.slane %v117, 2
    %v138 = vsel %vm123, %v134, %v136
    %v139 = vrot.slane %v112, 4
    %v141 = vrot.slane %v117, 3
    %v143 = vsel %vm123, %v139, %v141
    %v144 = vrot.slane %v112, 5
    %v146 = vrot.slane %v117, 4
    %v148 = vsel %vm123, %v144, %v146
    %v149 = vrot.slane %v112, 6
    %v151 = vrot.slane %v117, 5
    %v153 = vsel %vm123, %v149, %v151
    %v154 = vrot.slane %v112, 7
    %v156 = vrot.slane %v117, 6
    %v158 = vsel %vm123, %v154, %v156
    %v160 = vsel %vm38, 0.0, 0
    %162 = vmatprep.subr.mxu0 0.0
    %163 = vmatpush1.msra.mxu0 %v27
    %164 = vmatprep.subr.mxu0 0.0
    %165 = vmatpush1.msra.mxu0 %v28
    %166 = vmatprep.subr.mxu0 0.0
    %167 = vmatpush1.msra.mxu0 %v29
    %168 = vmatprep.subr.mxu0 0.0
    %169 = vmatpush1.msra.mxu0 %v30
    %170 = vmatprep.subr.mxu0 0.0
    %171 = vmatpush1.msra.mxu0 0.0
    %172 = vmatprep.subr.mxu0 0.0
    %173 = vmatpush1.msra.mxu0 0.0
    %174 = vmatprep.subr.mxu0 0.0
    %175 = vmatpush1.msra.mxu0 0.0
    %176 = vmatprep.subr.mxu0 0.0
    %177 = vmatpush1.msra.mxu0 0.0
    %178 = vmatprep.subr.mxu0 0.0
    %179 = vmatpush1.msra.mxu0 0.0
    %180 = vmatprep.subr.mxu0 0.0
    %181 = vmatpush1.msra.mxu0 0.0
    %182 = vmatprep.subr.mxu0 0.0
    %183 = vmatpush1.msra.mxu0 0.0
    %184 = vmatprep.subr.mxu0 0.0
    %185 = vmatpush1.msra.mxu0 0.0
    %186 = vmatprep.subr.mxu0 0.0
    %187 = vmatpush1.msra.mxu0 0.0
    %188 = vmatprep.subr.mxu0 0.0
    %189 = vmatpush1.msra.mxu0 0.0
    %190 = vmatprep.subr.mxu0 0.0
    %191 = vmatpush1.msra.mxu0 0.0
    %192 = vmatprep.subr.mxu0 0.0
    %193 = vmatpush1.msra.mxu0 0.0
    %194 = vmatprep.subr.mxu0 0.0
    %195 = vmatpush1.msra.mxu0 0.0
    %196 = vmatprep.subr.mxu0 0.0
    %197 = vmatpush1.msra.mxu0 0.0
    %198 = vmatprep.subr.mxu0 0.0
    %199 = vmatpush1.msra.mxu0 0.0
    %200 = vmatprep.subr.mxu0 0.0
    %201 = vmatpush1.msra.mxu0 0.0
    %202 = vmatprep.subr.mxu0 0.0
    %203 = vmatpush1.msra.mxu0 0.0
    %204 = vmatprep.subr.mxu0 0.0
    %205 = vmatpush1.msra.mxu0 0.0
    %206 = vmatprep.subr.mxu0 0.0
    %207 = vmatpush1.msra.mxu0 0.0
    %208 = vmatprep.subr.mxu0 0.0
    %209 = vmatpush1.msra.mxu0 0.0
    %210 = vmatprep.subr.mxu0 0.0
    %211 = vmatpush1.msra.mxu0 0.0
    %212 = vmatprep.subr.mxu0 0.0
    %213 = vmatpush1.msra.mxu0 0.0
    %214 = vmatprep.subr.mxu0 0.0
    %215 = vmatpush1.msra.mxu0 0.0
    %216 = vmatprep.subr.mxu0 0.0
    %217 = vmatpush1.msra.mxu0 0.0
    %218 = vmatprep.subr.mxu0 0.0
    %219 = vmatpush1.msra.mxu0 0.0
    %220 = vmatprep.subr.mxu0 0.0
    %221 = vmatpush1.msra.mxu0 0.0
    %222 = vmatprep.subr.mxu0 0.0
    %223 = vmatpush1.msra.mxu0 0.0
    %224 = vmatprep.subr.mxu0 0.0
    %225 = vmatpush1.msra.mxu0 0.0
    %226 = vmatprep.mubr.f32.mxu0 0.0
    %227 = vmatmul.mubr.f32.gmra.mrb[0].mxu0 %v160
    %v228 = vpop.f32.mrb[0].mxu0
    %v229 = vadd.f32 0.0, %v228
    %v230 = vpop.f32.mrb[0].mxu0
    %231 = vdwg.mxu0
    %v232 = vadd.f32 %v124, %v229
    %v233 = vtanh.pop %v232
    %v235 = vsel %vm38, %v233, 0
    %237 = vmatprep.subr.mxu0 0.0
    %238 = vmatpush1.msra.mxu0 %v27
    %239 = vmatprep.subr.mxu0 0.0
    %240 = vmatpush1.msra.mxu0 %v28
    %241 = vmatprep.subr.mxu0 0.0
    %242 = vmatpush1.msra.mxu0 %v29
    %243 = vmatprep.subr.mxu0 0.0
    %244 = vmatpush1.msra.mxu0 %v30
    %245 = vmatprep.subr.mxu0 0.0
    %246 = vmatpush1.msra.mxu0 0.0
    %247 = vmatprep.subr.mxu0 0.0
    %248 = vmatpush1.msra.mxu0 0.0
    %249 = vmatprep.subr.mxu0 0.0
    %250 = vmatpush1.msra.mxu0 0.0
    %251 = vmatprep.subr.mxu0 0.0
    %252 = vmatpush1.msra.mxu0 0.0
    %253 = vmatprep.subr.mxu0 0.0
    %254 = vmatpush1.msra.mxu0 0.0
    %255 = vmatprep.subr.mxu0 0.0
    %256 = vmatpush1.msra.mxu0 0.0
    %257 = vmatprep.subr.mxu0 0.0
    %258 = vmatpush1.msra.mxu0 0.0
    %259 = vmatprep.subr.mxu0 0.0
    %260 = vmatpush1.msra.mxu0 0.0
    %261 = vmatprep.subr.mxu0 0.0
    %262 = vmatpush1.msra.mxu0 0.0
    %263 = vmatprep.subr.mxu0 0.0
    %264 = vmatpush1.msra.mxu0 0.0
    %265 = vmatprep.subr.mxu0 0.0
    %266 = vmatpush1.msra.mxu0 0.0
    %267 = vmatprep.subr.mxu0 0.0
    %268 = vmatpush1.msra.mxu0 0.0
    %269 = vmatprep.subr.mxu0 0.0
    %270 = vmatpush1.msra.mxu0 0.0
    %271 = vmatprep.subr.mxu0 0.0
    %272 = vmatpush1.msra.mxu0 0.0
    %273 = vmatprep.subr.mxu0 0.0
    %274 = vmatpush1.msra.mxu0 0.0
    %275 = vmatprep.subr.mxu0 0.0
    %276 = vmatpush1.msra.mxu0 0.0
    %277 = vmatprep.subr.mxu0 0.0
    %278 = vmatpush1.msra.mxu0 0.0
    %279 = vmatprep.subr.mxu0 0.0
    %280 = vmatpush1.msra.mxu0 0.0
    %281 = vmatprep.subr.mxu0 0.0
    %282 = vmatpush1.msra.mxu0 0.0
    %283 = vmatprep.subr.mxu0 0.0
    %284 = vmatpush1.msra.mxu0 0.0
    %285 = vmatprep.subr.mxu0 0.0
    %286 = vmatpush1.msra.mxu0 0.0
    %287 = vmatprep.subr.mxu0 0.0
    %288 = vmatpush1.msra.mxu0 0.0
    %289 = vmatprep.subr.mxu0 0.0
    %290 = vmatpush1.msra.mxu0 0.0
    %291 = vmatprep.subr.mxu0 0.0
    %292 = vmatpush1.msra.mxu0 0.0
    %293 = vmatprep.subr.mxu0 0.0
    %294 = vmatpush1.msra.mxu0 0.0
    %295 = vmatprep.subr.mxu0 0.0
    %296 = vmatpush1.msra.mxu0 0.0
    %297 = vmatprep.subr.mxu0 0.0
    %298 = vmatpush1.msra.mxu0 0.0
    %299 = vmatprep.subr.mxu0 0.0
    %300 = vmatpush1.msra.mxu0 0.0
    %301 = vmatprep.mubr.f32.mxu0 0.0
    %302 = vmatmul.mubr.f32.gmra.mrb[0].mxu0 %v235
    %v303 = vpop.f32.mrb[0].mxu0
    %v304 = vadd.f32 0.0, %v303
    %v305 = vpop.f32.mrb[0].mxu0
    %306 = vdwg.mxu0
    %v307 = vadd.f32 %v128, %v304
    %v308 = vtanh.pop %v307
    %v310 = vsel %vm38, %v308, 0
    %312 = vmatprep.subr.mxu0 0.0
    %313 = vmatpush1.msra.mxu0 %v27
    %314 = vmatprep.subr.mxu0 0.0
    %315 = vmatpush1.msra.mxu0 %v28
    %316 = vmatprep.subr.mxu0 0.0
    %317 = vmatpush1.msra.mxu0 %v29
    %318 = vmatprep.subr.mxu0 0.0
    %319 = vmatpush1.msra.mxu0 %v30
    %320 = vmatprep.subr.mxu0 0.0
    %321 = vmatpush1.msra.mxu0 0.0
    %322 = vmatprep.subr.mxu0 0.0
    %323 = vmatpush1.msra.mxu0 0.0
    %324 = vmatprep.subr.mxu0 0.0
    %325 = vmatpush1.msra.mxu0 0.0
    %326 = vmatprep.subr.mxu0 0.0
    %327 = vmatpush1.msra.mxu0 0.0
    %328 = vmatprep.subr.mxu0 0.0
    %329 = vmatpush1.msra.mxu0 0.0
    %330 = vmatprep.subr.mxu0 0.0
    %331 = vmatpush1.msra.mxu0 0.0
    %332 = vmatprep.subr.mxu0 0.0
    %333 = vmatpush1.msra.mxu0 0.0
    %334 = vmatprep.subr.mxu0 0.0
    %335 = vmatpush1.msra.mxu0 0.0
    %336 = vmatprep.subr.mxu0 0.0
    %337 = vmatpush1.msra.mxu0 0.0
    %338 = vmatprep.subr.mxu0 0.0
    %339 = vmatpush1.msra.mxu0 0.0
    %340 = vmatprep.subr.mxu0 0.0
    %341 = vmatpush1.msra.mxu0 0.0
    %342 = vmatprep.subr.mxu0 0.0
    %343 = vmatpush1.msra.mxu0 0.0
    %344 = vmatprep.subr.mxu0 0.0
    %345 = vmatpush1.msra.mxu0 0.0
    %346 = vmatprep.subr.mxu0 0.0
    %347 = vmatpush1.msra.mxu0 0.0
    %348 = vmatprep.subr.mxu0 0.0
    %349 = vmatpush1.msra.mxu0 0.0
    %350 = vmatprep.subr.mxu0 0.0
    %351 = vmatpush1.msra.mxu0 0.0
    %352 = vmatprep.subr.mxu0 0.0
    %353 = vmatpush1.msra.mxu0 0.0
    %354 = vmatprep.subr.mxu0 0.0
    %355 = vmatpush1.msra.mxu0 0.0
    %356 = vmatprep.subr.mxu0 0.0
    %357 = vmatpush1.msra.mxu0 0.0
    %358 = vmatprep.subr.mxu0 0.0
    %359 = vmatpush1.msra.mxu0 0.0
    %360 = vmatprep.subr.mxu0 0.0
    %361 = vmatpush1.msra.mxu0 0.0
    %362 = vmatprep.subr.mxu0 0.0
    %363 = vmatpush1.msra.mxu0 0.0
    %364 = vmatprep.subr.mxu0 0.0
    %365 = vmatpush1.msra.mxu0 0.0
    %366 = vmatprep.subr.mxu0 0.0
    %367 = vmatpush1.msra.mxu0 0.0
    %368 = vmatprep.subr.mxu0 0.0
    %369 = vmatpush1.msra.mxu0 0.0
    %370 = vmatprep.subr.mxu0 0.0
    %371 = vmatpush1.msra.mxu0 0.0
    %372 = vmatprep.subr.mxu0 0.0
    %373 = vmatpush1.msra.mxu0 0.0
    %374 = vmatprep.subr.mxu0 0.0
    %375 = vmatpush1.msra.mxu0 0.0
    %376 = vmatprep.mubr.f32.mxu0 0.0
    %377 = vmatmul.mubr.f32.gmra.mrb[0].mxu0 %v310
    %v378 = vpop.f32.mrb[0].mxu0
    %v379 = vadd.f32 0.0, %v378
    %v380 = vpop.f32.mrb[0].mxu0
    %381 = vdwg.mxu0
    %v382 = vadd.f32 %v133, %v379
    %v383 = vtanh.pop %v382
    %v385 = vsel %vm38, %v383, 0
    %387 = vmatprep.subr.mxu0 0.0
    %388 = vmatpush1.msra.mxu0 %v27
    %389 = vmatprep.subr.mxu0 0.0
    %390 = vmatpush1.msra.mxu0 %v28
    %391 = vmatprep.subr.mxu0 0.0
    %392 = vmatpush1.msra.mxu0 %v29
    %393 = vmatprep.subr.mxu0 0.0
    %394 = vmatpush1.msra.mxu0 %v30
    %395 = vmatprep.subr.mxu0 0.0
    %396 = vmatpush1.msra.mxu0 0.0
    %397 = vmatprep.subr.mxu0 0.0
    %398 = vmatpush1.msra.mxu0 0.0
    %399 = vmatprep.subr.mxu0 0.0
    %400 = vmatpush1.msra.mxu0 0.0
    %401 = vmatprep.subr.mxu0 0.0
    %402 = vmatpush1.msra.mxu0 0.0
    %403 = vmatprep.subr.mxu0 0.0
    %404 = vmatpush1.msra.mxu0 0.0
    %405 = vmatprep.subr.mxu0 0.0
    %406 = vmatpush1.msra.mxu0 0.0
    %407 = vmatprep.subr.mxu0 0.0
    %408 = vmatpush1.msra.mxu0 0.0
    %409 = vmatprep.subr.mxu0 0.0
    %410 = vmatpush1.msra.mxu0 0.0
    %411 = vmatprep.subr.mxu0 0.0
    %412 = vmatpush1.msra.mxu0 0.0
    %413 = vmatprep.subr.mxu0 0.0
    %414 = vmatpush1.msra.mxu0 0.0
    %415 = vmatprep.subr.mxu0 0.0
    %416 = vmatpush1.msra.mxu0 0.0
    %417 = vmatprep.subr.mxu0 0.0
    %418 = vmatpush1.msra.mxu0 0.0
    %419 = vmatprep.subr.mxu0 0.0
    %420 = vmatpush1.msra.mxu0 0.0
    %421 = vmatprep.subr.mxu0 0.0
    %422 = vmatpush1.msra.mxu0 0.0
    %423 = vmatprep.subr.mxu0 0.0
    %424 = vmatpush1.msra.mxu0 0.0
    %425 = vmatprep.subr.mxu0 0.0
    %426 = vmatpush1.msra.mxu0 0.0
    %427 = vmatprep.subr.mxu0 0.0
    %428 = vmatpush1.msra.mxu0 0.0
    %429 = vmatprep.subr.mxu0 0.0
    %430 = vmatpush1.msra.mxu0 0.0
    %431 = vmatprep.subr.mxu0 0.0
    %432 = vmatpush1.msra.mxu0 0.0
    %433 = vmatprep.subr.mxu0 0.0
    %434 = vmatpush1.msra.mxu0 0.0
    %435 = vmatprep.subr.mxu0 0.0
    %436 = vmatpush1.msra.mxu0 0.0
    %437 = vmatprep.subr.mxu0 0.0
    %438 = vmatpush1.msra.mxu0 0.0
    %439 = vmatprep.subr.mxu0 0.0
    %440 = vmatpush1.msra.mxu0 0.0
    %441 = vmatprep.subr.mxu0 0.0
    %442 = vmatpush1.msra.mxu0 0.0
    %443 = vmatprep.subr.mxu0 0.0
    %444 = vmatpush1.msra.mxu0 0.0
    %445 = vmatprep.subr.mxu0 0.0
    %446 = vmatpush1.msra.mxu0 0.0
    %447 = vmatprep.subr.mxu0 0.0
    %448 = vmatpush1.msra.mxu0 0.0
    %449 = vmatprep.subr.mxu0 0.0
    %450 = vmatpush1.msra.mxu0 0.0
    %451 = vmatprep.mubr.f32.mxu0 0.0
    %452 = vmatmul.mubr.f32.gmra.mrb[0].mxu0 %v385
    %v453 = vpop.f32.mrb[0].mxu0
    %v454 = vadd.f32 0.0, %v453
    %v455 = vpop.f32.mrb[0].mxu0
    %456 = vdwg.mxu0
    %v457 = vadd.f32 %v138, %v454
    %v458 = vtanh.pop %v457
    %v460 = vsel %vm38, %v458, 0
    %462 = vmatprep.subr.mxu0 0.0
    %463 = vmatpush1.msra.mxu0 %v27
    %464 = vmatprep.subr.mxu0 0.0
    %465 = vmatpush1.msra.mxu0 %v28
    %466 = vmatprep.subr.mxu0 0.0
    %467 = vmatpush1.msra.mxu0 %v29
    %468 = vmatprep.subr.mxu0 0.0
    %469 = vmatpush1.msra.mxu0 %v30
    %470 = vmatprep.subr.mxu0 0.0
    %471 = vmatpush1.msra.mxu0 0.0
    %472 = vmatprep.subr.mxu0 0.0
    %473 = vmatpush1.msra.mxu0 0.0
    %474 = vmatprep.subr.mxu0 0.0
    %475 = vmatpush1.msra.mxu0 0.0
    %476 = vmatprep.subr.mxu0 0.0
    %477 = vmatpush1.msra.mxu0 0.0
    %478 = vmatprep.subr.mxu0 0.0
    %479 = vmatpush1.msra.mxu0 0.0
    %480 = vmatprep.subr.mxu0 0.0
    %481 = vmatpush1.msra.mxu0 0.0
    %482 = vmatprep.subr.mxu0 0.0
    %483 = vmatpush1.msra.mxu0 0.0
    %484 = vmatprep.subr.mxu0 0.0
    %485 = vmatpush1.msra.mxu0 0.0
    %486 = vmatprep.subr.mxu0 0.0
    %487 = vmatpush1.msra.mxu0 0.0
    %488 = vmatprep.subr.mxu0 0.0
    %489 = vmatpush1.msra.mxu0 0.0
    %490 = vmatprep.subr.mxu0 0.0
    %491 = vmatpush1.msra.mxu0 0.0
    %492 = vmatprep.subr.mxu0 0.0
    %493 = vmatpush1.msra.mxu0 0.0
    %494 = vmatprep.subr.mxu0 0.0
    %495 = vmatpush1.msra.mxu0 0.0
    %496 = vmatprep.subr.mxu0 0.0
    %497 = vmatpush1.msra.mxu0 0.0
    %498 = vmatprep.subr.mxu0 0.0
    %499 = vmatpush1.msra.mxu0 0.0
    %500 = vmatprep.subr.mxu0 0.0
    %501 = vmatpush1.msra.mxu0 0.0
    %502 = vmatprep.subr.mxu0 0.0
    %503 = vmatpush1.msra.mxu0 0.0
    %504 = vmatprep.subr.mxu0 0.0
    %505 = vmatpush1.msra.mxu0 0.0
    %506 = vmatprep.subr.mxu0 0.0
    %507 = vmatpush1.msra.mxu0 0.0
    %508 = vmatprep.subr.mxu0 0.0
    %509 = vmatpush1.msra.mxu0 0.0
    %510 = vmatprep.subr.mxu0 0.0
    %511 = vmatpush1.msra.mxu0 0.0
    %512 = vmatprep.subr.mxu0 0.0
    %513 = vmatpush1.msra.mxu0 0.0
    %514 = vmatprep.subr.mxu0 0.0
    %515 = vmatpush1.msra.mxu0 0.0
    %516 = vmatprep.subr.mxu0 0.0
    %517 = vmatpush1.msra.mxu0 0.0
    %518 = vmatprep.subr.mxu0 0.0
    %519 = vmatpush1.msra.mxu0 0.0
    %520 = vmatprep.subr.mxu0 0.0
    %521 = vmatpush1.msra.mxu0 0.0
    %522 = vmatprep.subr.mxu0 0.0
    %523 = vmatpush1.msra.mxu0 0.0
    %524 = vmatprep.subr.mxu0 0.0
    %525 = vmatpush1.msra.mxu0 0.0
    %526 = vmatprep.mubr.f32.mxu0 0.0
    %527 = vmatmul.mubr.f32.gmra.mrb[0].mxu0 %v460
    %v528 = vpop.f32.mrb[0].mxu0
    %v529 = vadd.f32 0.0, %v528
    %v530 = vpop.f32.mrb[0].mxu0
    %531 = vdwg.mxu0
    %v532 = vadd.f32 %v143, %v529
    %v533 = vtanh.pop %v532
    %v535 = vsel %vm38, %v533, 0
    %537 = vmatprep.subr.mxu0 0.0
    %538 = vmatpush1.msra.mxu0 %v27
    %539 = vmatprep.subr.mxu0 0.0
    %540 = vmatpush1.msra.mxu0 %v28
    %541 = vmatprep.subr.mxu0 0.0
    %542 = vmatpush1.msra.mxu0 %v29
    %543 = vmatprep.subr.mxu0 0.0
    %544 = vmatpush1.msra.mxu0 %v30
    %545 = vmatprep.subr.mxu0 0.0
    %546 = vmatpush1.msra.mxu0 0.0
    %547 = vmatprep.subr.mxu0 0.0
    %548 = vmatpush1.msra.mxu0 0.0
    %549 = vmatprep.subr.mxu0 0.0
    %550 = vmatpush1.msra.mxu0 0.0
    %551 = vmatprep.subr.mxu0 0.0
    %552 = vmatpush1.msra.mxu0 0.0
    %553 = vmatprep.subr.mxu0 0.0
    %554 = vmatpush1.msra.mxu0 0.0
    %555 = vmatprep.subr.mxu0 0.0
    %556 = vmatpush1.msra.mxu0 0.0
    %557 = vmatprep.subr.mxu0 0.0
    %558 = vmatpush1.msra.mxu0 0.0
    %559 = vmatprep.subr.mxu0 0.0
    %560 = vmatpush1.msra.mxu0 0.0
    %561 = vmatprep.subr.mxu0 0.0
    %562 = vmatpush1.msra.mxu0 0.0
    %563 = vmatprep.subr.mxu0 0.0
    %564 = vmatpush1.msra.mxu0 0.0
    %565 = vmatprep.subr.mxu0 0.0
    %566 = vmatpush1.msra.mxu0 0.0
    %567 = vmatprep.subr.mxu0 0.0
    %568 = vmatpush1.msra.mxu0 0.0
    %569 = vmatprep.subr.mxu0 0.0
    %570 = vmatpush1.msra.mxu0 0.0
    %571 = vmatprep.subr.mxu0 0.0
    %572 = vmatpush1.msra.mxu0 0.0
    %573 = vmatprep.subr.mxu0 0.0
    %574 = vmatpush1.msra.mxu0 0.0
    %575 = vmatprep.subr.mxu0 0.0
    %576 = vmatpush1.msra.mxu0 0.0
    %577 = vmatprep.subr.mxu0 0.0
    %578 = vmatpush1.msra.mxu0 0.0
    %579 = vmatprep.subr.mxu0 0.0
    %580 = vmatpush1.msra.mxu0 0.0
    %581 = vmatprep.subr.mxu0 0.0
    %582 = vmatpush1.msra.mxu0 0.0
    %583 = vmatprep.subr.mxu0 0.0
    %584 = vmatpush1.msra.mxu0 0.0
    %585 = vmatprep.subr.mxu0 0.0
    %586 = vmatpush1.msra.mxu0 0.0
    %587 = vmatprep.subr.mxu0 0.0
    %588 = vmatpush1.msra.mxu0 0.0
    %589 = vmatprep.subr.mxu0 0.0
    %590 = vmatpush1.msra.mxu0 0.0
    %591 = vmatprep.subr.mxu0 0.0
    %592 = vmatpush1.msra.mxu0 0.0
    %593 = vmatprep.subr.mxu0 0.0
    %594 = vmatpush1.msra.mxu0 0.0
    %595 = vmatprep.subr.mxu0 0.0
    %596 = vmatpush1.msra.mxu0 0.0
    %597 = vmatprep.subr.mxu0 0.0
    %598 = vmatpush1.msra.mxu0 0.0
    %599 = vmatprep.subr.mxu0 0.0
    %600 = vmatpush1.msra.mxu0 0.0
    %601 = vmatprep.mubr.f32.mxu0 0.0
    %602 = vmatmul.mubr.f32.gmra.mrb[0].mxu0 %v535
    %v603 = vpop.f32.mrb[0].mxu0
    %v604 = vadd.f32 0.0, %v603
    %v605 = vpop.f32.mrb[0].mxu0
    %606 = vdwg.mxu0
    %v607 = vadd.f32 %v148, %v604
    %v608 = vtanh.pop %v607
    %v610 = vsel %vm38, %v608, 0
    %612 = vmatprep.subr.mxu0 0.0
    %613 = vmatpush1.msra.mxu0 %v27
    %614 = vmatprep.subr.mxu0 0.0
    %615 = vmatpush1.msra.mxu0 %v28
    %616 = vmatprep.subr.mxu0 0.0
    %617 = vmatpush1.msra.mxu0 %v29
    %618 = vmatprep.subr.mxu0 0.0
    %619 = vmatpush1.msra.mxu0 %v30
    %620 = vmatprep.subr.mxu0 0.0
    %621 = vmatpush1.msra.mxu0 0.0
    %622 = vmatprep.subr.mxu0 0.0
    %623 = vmatpush1.msra.mxu0 0.0
    %624 = vmatprep.subr.mxu0 0.0
    %625 = vmatpush1.msra.mxu0 0.0
    %626 = vmatprep.subr.mxu0 0.0
    %627 = vmatpush1.msra.mxu0 0.0
    %628 = vmatprep.subr.mxu0 0.0
    %629 = vmatpush1.msra.mxu0 0.0
    %630 = vmatprep.subr.mxu0 0.0
    %631 = vmatpush1.msra.mxu0 0.0
    %632 = vmatprep.subr.mxu0 0.0
    %633 = vmatpush1.msra.mxu0 0.0
    %634 = vmatprep.subr.mxu0 0.0
    %635 = vmatpush1.msra.mxu0 0.0
    %636 = vmatprep.subr.mxu0 0.0
    %637 = vmatpush1.msra.mxu0 0.0
    %638 = vmatprep.subr.mxu0 0.0
    %639 = vmatpush1.msra.mxu0 0.0
    %640 = vmatprep.subr.mxu0 0.0
    %641 = vmatpush1.msra.mxu0 0.0
    %642 = vmatprep.subr.mxu0 0.0
    %643 = vmatpush1.msra.mxu0 0.0
    %644 = vmatprep.subr.mxu0 0.0
    %645 = vmatpush1.msra.mxu0 0.0
    %646 = vmatprep.subr.mxu0 0.0
    %647 = vmatpush1.msra.mxu0 0.0
    %648 = vmatprep.subr.mxu0 0.0
    %649 = vmatpush1.msra.mxu0 0.0
    %650 = vmatprep.subr.mxu0 0.0
    %651 = vmatpush1.msra.mxu0 0.0
    %652 = vmatprep.subr.mxu0 0.0
    %653 = vmatpush1.msra.mxu0 0.0
    %654 = vmatprep.subr.mxu0 0.0
    %655 = vmatpush1.msra.mxu0 0.0
    %656 = vmatprep.subr.mxu0 0.0
    %657 = vmatpush1.msra.mxu0 0.0
    %658 = vmatprep.subr.mxu0 0.0
    %659 = vmatpush1.msra.mxu0 0.0
    %660 = vmatprep.subr.mxu0 0.0
    %661 = vmatpush1.msra.mxu0 0.0
    %662 = vmatprep.subr.mxu0 0.0
    %663 = vmatpush1.msra.mxu0 0.0
    %664 = vmatprep.subr.mxu0 0.0
    %665 = vmatpush1.msra.mxu0 0.0
    %666 = vmatprep.subr.mxu0 0.0
    %667 = vmatpush1.msra.mxu0 0.0
    %668 = vmatprep.subr.mxu0 0.0
    %669 = vmatpush1.msra.mxu0 0.0
    %670 = vmatprep.subr.mxu0 0.0
    %671 = vmatpush1.msra.mxu0 0.0
    %672 = vmatprep.subr.mxu0 0.0
    %673 = vmatpush1.msra.mxu0 0.0
    %674 = vmatprep.subr.mxu0 0.0
    %675 = vmatpush1.msra.mxu0 0.0
    %676 = vmatprep.mubr.f32.mxu0 0.0
    %677 = vmatmul.mubr.f32.gmra.mrb[0].mxu0 %v610
    %v678 = vpop.f32.mrb[0].mxu0
    %v679 = vadd.f32 0.0, %v678
    %v680 = vpop.f32.mrb[0].mxu0
    %681 = vdwg.mxu0
    %v682 = vadd.f32 %v153, %v679
    %v683 = vtanh.pop %v682
    %v685 = vsel %vm38, %v683, 0
    %687 = vmatprep.subr.mxu0 0.0
    %688 = vmatpush1.msra.mxu0 %v27
    %689 = vmatprep.subr.mxu0 0.0
    %690 = vmatpush1.msra.mxu0 %v28
    %691 = vmatprep.subr.mxu0 0.0
    %692 = vmatpush1.msra.mxu0 %v29
    %693 = vmatprep.subr.mxu0 0.0
    %694 = vmatpush1.msra.mxu0 %v30
    %695 = vmatprep.subr.mxu0 0.0
    %696 = vmatpush1.msra.mxu0 0.0
    %697 = vmatprep.subr.mxu0 0.0
    %698 = vmatpush1.msra.mxu0 0.0
    %699 = vmatprep.subr.mxu0 0.0
    %700 = vmatpush1.msra.mxu0 0.0
    %701 = vmatprep.subr.mxu0 0.0
    %702 = vmatpush1.msra.mxu0 0.0
    %703 = vmatprep.subr.mxu0 0.0
    %704 = vmatpush1.msra.mxu0 0.0
    %705 = vmatprep.subr.mxu0 0.0
    %706 = vmatpush1.msra.mxu0 0.0
    %707 = vmatprep.subr.mxu0 0.0
    %708 = vmatpush1.msra.mxu0 0.0
    %709 = vmatprep.subr.mxu0 0.0
    %710 = vmatpush1.msra.mxu0 0.0
    %711 = vmatprep.subr.mxu0 0.0
    %712 = vmatpush1.msra.mxu0 0.0
    %713 = vmatprep.subr.mxu0 0.0
    %714 = vmatpush1.msra.mxu0 0.0
    %715 = vmatprep.subr.mxu0 0.0
    %716 = vmatpush1.msra.mxu0 0.0
    %717 = vmatprep.subr.mxu0 0.0
    %718 = vmatpush1.msra.mxu0 0.0
    %719 = vmatprep.subr.mxu0 0.0
    %720 = vmatpush1.msra.mxu0 0.0
    %721 = vmatprep.subr.mxu0 0.0
    %722 = vmatpush1.msra.mxu0 0.0
    %723 = vmatprep.subr.mxu0 0.0
    %724 = vmatpush1.msra.mxu0 0.0
    %725 = vmatprep.subr.mxu0 0.0
    %726 = vmatpush1.msra.mxu0 0.0
    %727 = vmatprep.subr.mxu0 0.0
    %728 = vmatpush1.msra.mxu0 0.0
    %729 = vmatprep.subr.mxu0 0.0
    %730 = vmatpush1.msra.mxu0 0.0
    %731 = vmatprep.subr.mxu0 0.0
    %732 = vmatpush1.msra.mxu0 0.0
    %733 = vmatprep.subr.mxu0 0.0
    %734 = vmatpush1.msra.mxu0 0.0
    %735 = vmatprep.subr.mxu0 0.0
    %736 = vmatpush1.msra.mxu0 0.0
    %737 = vmatprep.subr.mxu0 0.0
    %738 = vmatpush1.msra.mxu0 0.0
    %739 = vmatprep.subr.mxu0 0.0
    %740 = vmatpush1.msra.mxu0 0.0
    %741 = vmatprep.subr.mxu0 0.0
    %742 = vmatpush1.msra.mxu0 0.0
    %743 = vmatprep.subr.mxu0 0.0
    %744 = vmatpush1.msra.mxu0 0.0
    %745 = vmatprep.subr.mxu0 0.0
    %746 = vmatpush1.msra.mxu0 0.0
    %747 = vmatprep.subr.mxu0 0.0
    %748 = vmatpush1.msra.mxu0 0.0
    %749 = vmatprep.subr.mxu0 0.0
    %750 = vmatpush1.msra.mxu0 0.0
    %751 = vmatprep.mubr.f32.mxu0 0.0
    %752 = vmatmul.mubr.f32.gmra.mrb[0].mxu0 %v685
    %v753 = vpop.f32.mrb[0].mxu0
    %v754 = vadd.f32 0.0, %v753
    %v755 = vpop.f32.mrb[0].mxu0
    %756 = vdwg.mxu0
    %v757 = vadd.f32 %v158, %v754
    %v758 = vtanh.pop %v757
    %v759 = vrot.slane %v308, 6
    %v761 = vrot.slane %v383, 4
    %v763 = vrot.slane %v458, 2
    %v765 = vrot.slane %v608, 6
    %v767 = vrot.slane %v683, 4
    %v770 = vrot.slane %v758, 2
    %vm772 = vcmask 1041408
    %v773 = vsel %vm772, %v233, %v759
    %vm774 = vcmask 1043456
    %v775 = vsel %vm774, %v773, %v761
    %vm776 = vcmask 1045504
    %v777 = vsel %vm776, %v775, %v763
    %v778 = vsel %vm772, %v533, %v765
    %v779 = vsel %vm774, %v778, %v767
    %v780 = vsel %vm776, %v779, %v770
    %s781 = scalar_lea.vmem %s1, 32
    %v782 = vld [vmem:[%s781] sm:$0xff]
    %v783 = vld [vmem:[%s781 + $0x8] sm:$0xff]
    %v784 = vld [vmem:[%s781 + $0x10] sm:$0xff]
    %v785 = vld [vmem:[%s781 + $0x18] sm:$0xff]
    %s786 = scalar_lea.vmem %s2, 32
    %v787 = vld [vmem:[%s786] sm:$0xff]
    %v788 = vld [vmem:[%s786 + $0x8] sm:$0xff]
    %v789 = vld [vmem:[%s786 + $0x10] sm:$0xff]
    %v790 = vld [vmem:[%s786 + $0x18] sm:$0xff]
    %s791 = scalar_lea.vmem %s3, 1
    %v792 = vld [vmem:[%s791] sm:$0x1]
    %v794 = vlaneseq
    %v795 = vshrl.u32 %v794, 7
    %v796 = vsub.s32 0, %v795
    %v797 = vrot.slane %v792, %v796
    %v800 = vsel %vm38, %v777, 0
    %v803 = vsel %vm38, %v780, 0
    %805 = vmatprep.subr.mxu0 0.0
    %806 = vmatpush1.msra.mxu0 %v782
    %807 = vmatprep.subr.mxu0 0.0
    %808 = vmatpush1.msra.mxu0 %v783
    %809 = vmatprep.subr.mxu0 0.0
    %810 = vmatpush1.msra.mxu0 %v784
    %811 = vmatprep.subr.mxu0 0.0
    %812 = vmatpush1.msra.mxu0 %v785
    %813 = vmatprep.subr.mxu0 0.0
    %814 = vmatpush1.msra.mxu0 0.0
    %815 = vmatprep.subr.mxu0 0.0
    %816 = vmatpush1.msra.mxu0 0.0
    %817 = vmatprep.subr.mxu0 0.0
    %818 = vmatpush1.msra.mxu0 0.0
    %819 = vmatprep.subr.mxu0 0.0
    %820 = vmatpush1.msra.mxu0 0.0
    %821 = vmatprep.subr.mxu0 0.0
    %822 = vmatpush1.msra.mxu0 0.0
    %823 = vmatprep.subr.mxu0 0.0
    %824 = vmatpush1.msra.mxu0 0.0
    %825 = vmatprep.subr.mxu0 0.0
    %826 = vmatpush1.msra.mxu0 0.0
    %827 = vmatprep.subr.mxu0 0.0
    %828 = vmatpush1.msra.mxu0 0.0
    %829 = vmatprep.subr.mxu0 0.0
    %830 = vmatpush1.msra.mxu0 0.0
    %831 = vmatprep.subr.mxu0 0.0
    %832 = vmatpush1.msra.mxu0 0.0
    %833 = vmatprep.subr.mxu0 0.0
    %834 = vmatpush1.msra.mxu0 0.0
    %835 = vmatprep.subr.mxu0 0.0
    %836 = vmatpush1.msra.mxu0 0.0
    %837 = vmatprep.subr.mxu0 0.0
    %838 = vmatpush1.msra.mxu0 0.0
    %839 = vmatprep.subr.mxu0 0.0
    %840 = vmatpush1.msra.mxu0 0.0
    %841 = vmatprep.subr.mxu0 0.0
    %842 = vmatpush1.msra.mxu0 0.0
    %843 = vmatprep.subr.mxu0 0.0
    %844 = vmatpush1.msra.mxu0 0.0
    %845 = vmatprep.subr.mxu0 0.0
    %846 = vmatpush1.msra.mxu0 0.0
    %847 = vmatprep.subr.mxu0 0.0
    %848 = vmatpush1.msra.mxu0 0.0
    %849 = vmatprep.subr.mxu0 0.0
    %850 = vmatpush1.msra.mxu0 0.0
    %851 = vmatprep.subr.mxu0 0.0
    %852 = vmatpush1.msra.mxu0 0.0
    %853 = vmatprep.subr.mxu0 0.0
    %854 = vmatpush1.msra.mxu0 0.0
    %855 = vmatprep.subr.mxu0 0.0
    %856 = vmatpush1.msra.mxu0 0.0
    %857 = vmatprep.subr.mxu0 0.0
    %858 = vmatpush1.msra.mxu0 0.0
    %859 = vmatprep.subr.mxu0 0.0
    %860 = vmatpush1.msra.mxu0 0.0
    %861 = vmatprep.subr.mxu0 0.0
    %862 = vmatpush1.msra.mxu0 0.0
    %863 = vmatprep.subr.mxu0 0.0
    %864 = vmatpush1.msra.mxu0 0.0
    %865 = vmatprep.subr.mxu0 0.0
    %866 = vmatpush1.msra.mxu0 0.0
    %867 = vmatprep.subr.mxu0 0.0
    %868 = vmatpush1.msra.mxu0 0.0
    %869 = vmatprep.mubr.f32.mxu0 0.0
    %870 = vmatmul.mubr.f32.gmra.mrb[0].mxu0 %v800
    %v871 = vpop.f32.mrb[0].mxu0
    %v872 = vadd.f32 %v797, %v871
    %v873 = vpop.f32.mrb[0].mxu0
    %874 = vmatprep.mubr.f32.mxu0 0.0
    %875 = vmatmul.mubr.f32.gmra.mrb[0].mxu0 %v803
    %v876 = vpop.f32.mrb[0].mxu0
    %v877 = vadd.f32 %v797, %v876
    %v878 = vpop.f32.mrb[0].mxu0
    %879 = vdwg.mxu0
    %880 = vmatprep.subr.mxu0 0.0
    %881 = vmatpush1.msra.mxu0 %v787
    %882 = vmatprep.subr.mxu0 0.0
    %883 = vmatpush1.msra.mxu0 %v788
    %884 = vmatprep.subr.mxu0 0.0
    %885 = vmatpush1.msra.mxu0 %v789
    %886 = vmatprep.subr.mxu0 0.0
    %887 = vmatpush1.msra.mxu0 %v790
    %888 = vmatprep.subr.mxu0 0.0
    %889 = vmatpush1.msra.mxu0 0.0
    %890 = vmatprep.subr.mxu0 0.0
    %891 = vmatpush1.msra.mxu0 0.0
    %892 = vmatprep.subr.mxu0 0.0
    %893 = vmatpush1.msra.mxu0 0.0
    %894 = vmatprep.subr.mxu0 0.0
    %895 = vmatpush1.msra.mxu0 0.0
    %896 = vmatprep.subr.mxu0 0.0
    %897 = vmatpush1.msra.mxu0 0.0
    %898 = vmatprep.subr.mxu0 0.0
    %899 = vmatpush1.msra.mxu0 0.0
    %900 = vmatprep.subr.mxu0 0.0
    %901 = vmatpush1.msra.mxu0 0.0
    %902 = vmatprep.subr.mxu0 0.0
    %903 = vmatpush1.msra.mxu0 0.0
    %904 = vmatprep.subr.mxu0 0.0
    %905 = vmatpush1.msra.mxu0 0.0
    %906 = vmatprep.subr.mxu0 0.0
    %907 = vmatpush1.msra.mxu0 0.0
    %908 = vmatprep.subr.mxu0 0.0
    %909 = vmatpush1.msra.mxu0 0.0
    %910 = vmatprep.subr.mxu0 0.0
    %911 = vmatpush1.msra.mxu0 0.0
    %912 = vmatprep.subr.mxu0 0.0
    %913 = vmatpush1.msra.mxu0 0.0
    %914 = vmatprep.subr.mxu0 0.0
    %915 = vmatpush1.msra.mxu0 0.0
    %916 = vmatprep.subr.mxu0 0.0
    %917 = vmatpush1.msra.mxu0 0.0
    %918 = vmatprep.subr.mxu0 0.0
    %919 = vmatpush1.msra.mxu0 0.0
    %920 = vmatprep.subr.mxu0 0.0
    %921 = vmatpush1.msra.mxu0 0.0
    %922 = vmatprep.subr.mxu0 0.0
    %923 = vmatpush1.msra.mxu0 0.0
    %924 = vmatprep.subr.mxu0 0.0
    %925 = vmatpush1.msra.mxu0 0.0
    %926 = vmatprep.subr.mxu0 0.0
    %927 = vmatpush1.msra.mxu0 0.0
    %928 = vmatprep.subr.mxu0 0.0
    %929 = vmatpush1.msra.mxu0 0.0
    %930 = vmatprep.subr.mxu0 0.0
    %931 = vmatpush1.msra.mxu0 0.0
    %932 = vmatprep.subr.mxu0 0.0
    %933 = vmatpush1.msra.mxu0 0.0
    %934 = vmatprep.subr.mxu0 0.0
    %935 = vmatpush1.msra.mxu0 0.0
    %936 = vmatprep.subr.mxu0 0.0
    %937 = vmatpush1.msra.mxu0 0.0
    %938 = vmatprep.subr.mxu0 0.0
    %939 = vmatpush1.msra.mxu0 0.0
    %940 = vmatprep.subr.mxu0 0.0
    %941 = vmatpush1.msra.mxu0 0.0
    %942 = vmatprep.subr.mxu0 0.0
    %943 = vmatpush1.msra.mxu0 0.0
    %944 = vmatprep.mubr.f32.mxu0 0.0
    %945 = vmatmul.mubr.f32.gmra.mrb[0].mxu0 %v160
    %v946 = vpop.f32.mrb[0].mxu0
    %v947 = vadd.f32 0.0, %v946
    %v948 = vpop.f32.mrb[0].mxu0
    %949 = vdwg.mxu0
    %v950 = vadd.f32 %v872, %v947
    %v951 = vtanh.pop %v950
    %v953 = vsel %vm38, %v951, 0
    %955 = vmatprep.subr.mxu0 0.0
    %956 = vmatpush1.msra.mxu0 %v787
    %957 = vmatprep.subr.mxu0 0.0
    %958 = vmatpush1.msra.mxu0 %v788
    %959 = vmatprep.subr.mxu0 0.0
    %960 = vmatpush1.msra.mxu0 %v789
    %961 = vmatprep.subr.mxu0 0.0
    %962 = vmatpush1.msra.mxu0 %v790
    %963 = vmatprep.subr.mxu0 0.0
    %964 = vmatpush1.msra.mxu0 0.0
    %965 = vmatprep.subr.mxu0 0.0
    %966 = vmatpush1.msra.mxu0 0.0
    %967 = vmatprep.subr.mxu0 0.0
    %968 = vmatpush1.msra.mxu0 0.0
    %969 = vmatprep.subr.mxu0 0.0
    %970 = vmatpush1.msra.mxu0 0.0
    %971 = vmatprep.subr.mxu0 0.0
    %972 = vmatpush1.msra.mxu0 0.0
    %973 = vmatprep.subr.mxu0 0.0
    %974 = vmatpush1.msra.mxu0 0.0
    %975 = vmatprep.subr.mxu0 0.0
    %976 = vmatpush1.msra.mxu0 0.0
    %977 = vmatprep.subr.mxu0 0.0
    %978 = vmatpush1.msra.mxu0 0.0
    %979 = vmatprep.subr.mxu0 0.0
    %980 = vmatpush1.msra.mxu0 0.0
    %981 = vmatprep.subr.mxu0 0.0
    %982 = vmatpush1.msra.mxu0 0.0
    %983 = vmatprep.subr.mxu0 0.0
    %984 = vmatpush1.msra.mxu0 0.0
    %985 = vmatprep.subr.mxu0 0.0
    %986 = vmatpush1.msra.mxu0 0.0
    %987 = vmatprep.subr.mxu0 0.0
    %988 = vmatpush1.msra.mxu0 0.0
    %989 = vmatprep.subr.mxu0 0.0
    %990 = vmatpush1.msra.mxu0 0.0
    %991 = vmatprep.subr.mxu0 0.0
    %992 = vmatpush1.msra.mxu0 0.0
    %993 = vmatprep.subr.mxu0 0.0
    %994 = vmatpush1.msra.mxu0 0.0
    %995 = vmatprep.subr.mxu0 0.0
    %996 = vmatpush1.msra.mxu0 0.0
    %997 = vmatprep.subr.mxu0 0.0
    %998 = vmatpush1.msra.mxu0 0.0
    %999 = vmatprep.subr.mxu0 0.0
    %1000 = vmatpush1.msra.mxu0 0.0
    %1001 = vmatprep.subr.mxu0 0.0
    %1002 = vmatpush1.msra.mxu0 0.0
    %1003 = vmatprep.subr.mxu0 0.0
    %1004 = vmatpush1.msra.mxu0 0.0
    %1005 = vmatprep.subr.mxu0 0.0
    %1006 = vmatpush1.msra.mxu0 0.0
    %1007 = vmatprep.subr.mxu0 0.0
    %1008 = vmatpush1.msra.mxu0 0.0
    %1009 = vmatprep.subr.mxu0 0.0
    %1010 = vmatpush1.msra.mxu0 0.0
    %1011 = vmatprep.subr.mxu0 0.0
    %1012 = vmatpush1.msra.mxu0 0.0
    %1013 = vmatprep.subr.mxu0 0.0
    %1014 = vmatpush1.msra.mxu0 0.0
    %1015 = vmatprep.subr.mxu0 0.0
    %1016 = vmatpush1.msra.mxu0 0.0
    %1017 = vmatprep.subr.mxu0 0.0
    %1018 = vmatpush1.msra.mxu0 0.0
    %1019 = vmatprep.mubr.f32.mxu0 0.0
    %1020 = vmatmul.mubr.f32.gmra.mrb[0].mxu0 %v953
    %v1021 = vpop.f32.mrb[0].mxu0
    %v1022 = vadd.f32 0.0, %v1021
    %v1023 = vpop.f32.mrb[0].mxu0
    %1024 = vdwg.mxu0
    %v1026 = vrot.slane %v1022, 6
    %v1028 = vadd.f32 %v872, %v1026
    %v1029 = vtanh.pop %v1028
    %v1031 = vrot.slane %v1029, 2
    %v1032 = vsel %vm38, %v1031, 0
    %1034 = vmatprep.subr.mxu0 0.0
    %1035 = vmatpush1.msra.mxu0 %v787
    %1036 = vmatprep.subr.mxu0 0.0
    %1037 = vmatpush1.msra.mxu0 %v788
    %1038 = vmatprep.subr.mxu0 0.0
    %1039 = vmatpush1.msra.mxu0 %v789
    %1040 = vmatprep.subr.mxu0 0.0
    %1041 = vmatpush1.msra.mxu0 %v790
    %1042 = vmatprep.subr.mxu0 0.0
    %1043 = vmatpush1.msra.mxu0 0.0
    %1044 = vmatprep.subr.mxu0 0.0
    %1045 = vmatpush1.msra.mxu0 0.0
    %1046 = vmatprep.subr.mxu0 0.0
    %1047 = vmatpush1.msra.mxu0 0.0
    %1048 = vmatprep.subr.mxu0 0.0
    %1049 = vmatpush1.msra.mxu0 0.0
    %1050 = vmatprep.subr.mxu0 0.0
    %1051 = vmatpush1.msra.mxu0 0.0
    %1052 = vmatprep.subr.mxu0 0.0
    %1053 = vmatpush1.msra.mxu0 0.0
    %1054 = vmatprep.subr.mxu0 0.0
    %1055 = vmatpush1.msra.mxu0 0.0
    %1056 = vmatprep.subr.mxu0 0.0
    %1057 = vmatpush1.msra.mxu0 0.0
    %1058 = vmatprep.subr.mxu0 0.0
    %1059 = vmatpush1.msra.mxu0 0.0
    %1060 = vmatprep.subr.mxu0 0.0
    %1061 = vmatpush1.msra.mxu0 0.0
    %1062 = vmatprep.subr.mxu0 0.0
    %1063 = vmatpush1.msra.mxu0 0.0
    %1064 = vmatprep.subr.mxu0 0.0
    %1065 = vmatpush1.msra.mxu0 0.0
    %1066 = vmatprep.subr.mxu0 0.0
    %1067 = vmatpush1.msra.mxu0 0.0
    %1068 = vmatprep.subr.mxu0 0.0
    %1069 = vmatpush1.msra.mxu0 0.0
    %1070 = vmatprep.subr.mxu0 0.0
    %1071 = vmatpush1.msra.mxu0 0.0
    %1072 = vmatprep.subr.mxu0 0.0
    %1073 = vmatpush1.msra.mxu0 0.0
    %1074 = vmatprep.subr.mxu0 0.0
    %1075 = vmatpush1.msra.mxu0 0.0
    %1076 = vmatprep.subr.mxu0 0.0
    %1077 = vmatpush1.msra.mxu0 0.0
    %1078 = vmatprep.subr.mxu0 0.0
    %1079 = vmatpush1.msra.mxu0 0.0
    %1080 = vmatprep.subr.mxu0 0.0
    %1081 = vmatpush1.msra.mxu0 0.0
    %1082 = vmatprep.subr.mxu0 0.0
    %1083 = vmatpush1.msra.mxu0 0.0
    %1084 = vmatprep.subr.mxu0 0.0
    %1085 = vmatpush1.msra.mxu0 0.0
    %1086 = vmatprep.subr.mxu0 0.0
    %1087 = vmatpush1.msra.mxu0 0.0
    %1088 = vmatprep.subr.mxu0 0.0
    %1089 = vmatpush1.msra.mxu0 0.0
    %1090 = vmatprep.subr.mxu0 0.0
    %1091 = vmatpush1.msra.mxu0 0.0
    %1092 = vmatprep.subr.mxu0 0.0
    %1093 = vmatpush1.msra.mxu0 0.0
    %1094 = vmatprep.subr.mxu0 0.0
    %1095 = vmatpush1.msra.mxu0 0.0
    %1096 = vmatprep.subr.mxu0 0.0
    %1097 = vmatpush1.msra.mxu0 0.0
    %1098 = vmatprep.mubr.f32.mxu0 0.0
    %1099 = vmatmul.mubr.f32.gmra.mrb[0].mxu0 %v1032
    %v1100 = vpop.f32.mrb[0].mxu0
    %v1101 = vadd.f32 0.0, %v1100
    %v1102 = vpop.f32.mrb[0].mxu0
    %1103 = vdwg.mxu0
    %v1105 = vrot.slane %v1101, 4
    %v1107 = vadd.f32 %v872, %v1105
    %v1108 = vtanh.pop %v1107
    %v1110 = vrot.slane %v1108, 4
    %v1111 = vsel %vm38, %v1110, 0
    %1113 = vmatprep.subr.mxu0 0.0
    %1114 = vmatpush1.msra.mxu0 %v787
    %1115 = vmatprep.subr.mxu0 0.0
    %1116 = vmatpush1.msra.mxu0 %v788
    %1117 = vmatprep.subr.mxu0 0.0
    %1118 = vmatpush1.msra.mxu0 %v789
    %1119 = vmatprep.subr.mxu0 0.0
    %1120 = vmatpush1.msra.mxu0 %v790
    %1121 = vmatprep.subr.mxu0 0.0
    %1122 = vmatpush1.msra.mxu0 0.0
    %1123 = vmatprep.subr.mxu0 0.0
    %1124 = vmatpush1.msra.mxu0 0.0
    %1125 = vmatprep.subr.mxu0 0.0
    %1126 = vmatpush1.msra.mxu0 0.0
    %1127 = vmatprep.subr.mxu0 0.0
    %1128 = vmatpush1.msra.mxu0 0.0
    %1129 = vmatprep.subr.mxu0 0.0
    %1130 = vmatpush1.msra.mxu0 0.0
    %1131 = vmatprep.subr.mxu0 0.0
    %1132 = vmatpush1.msra.mxu0 0.0
    %1133 = vmatprep.subr.mxu0 0.0
    %1134 = vmatpush1.msra.mxu0 0.0
    %1135 = vmatprep.subr.mxu0 0.0
    %1136 = vmatpush1.msra.mxu0 0.0
    %1137 = vmatprep.subr.mxu0 0.0
    %1138 = vmatpush1.msra.mxu0 0.0
    %1139 = vmatprep.subr.mxu0 0.0
    %1140 = vmatpush1.msra.mxu0 0.0
    %1141 = vmatprep.subr.mxu0 0.0
    %1142 = vmatpush1.msra.mxu0 0.0
    %1143 = vmatprep.subr.mxu0 0.0
    %1144 = vmatpush1.msra.mxu0 0.0
    %1145 = vmatprep.subr.mxu0 0.0
    %1146 = vmatpush1.msra.mxu0 0.0
    %1147 = vmatprep.subr.mxu0 0.0
    %1148 = vmatpush1.msra.mxu0 0.0
    %1149 = vmatprep.subr.mxu0 0.0
    %1150 = vmatpush1.msra.mxu0 0.0
    %1151 = vmatprep.subr.mxu0 0.0
    %1152 = vmatpush1.msra.mxu0 0.0
    %1153 = vmatprep.subr.mxu0 0.0
    %1154 = vmatpush1.msra.mxu0 0.0
    %1155 = vmatprep.subr.mxu0 0.0
    %1156 = vmatpush1.msra.mxu0 0.0
    %1157 = vmatprep.subr.mxu0 0.0
    %1158 = vmatpush1.msra.mxu0 0.0
    %1159 = vmatprep.subr.mxu0 0.0
    %1160 = vmatpush1.msra.mxu0 0.0
    %1161 = vmatprep.subr.mxu0 0.0
    %1162 = vmatpush1.msra.mxu0 0.0
    %1163 = vmatprep.subr.mxu0 0.0
    %1164 = vmatpush1.msra.mxu0 0.0
    %1165 = vmatprep.subr.mxu0 0.0
    %1166 = vmatpush1.msra.mxu0 0.0
    %1167 = vmatprep.subr.mxu0 0.0
    %1168 = vmatpush1.msra.mxu0 0.0
    %1169 = vmatprep.subr.mxu0 0.0
    %1170 = vmatpush1.msra.mxu0 0.0
    %1171 = vmatprep.subr.mxu0 0.0
    %1172 = vmatpush1.msra.mxu0 0.0
    %1173 = vmatprep.subr.mxu0 0.0
    %1174 = vmatpush1.msra.mxu0 0.0
    %1175 = vmatprep.subr.mxu0 0.0
    %1176 = vmatpush1.msra.mxu0 0.0
    %1177 = vmatprep.mubr.f32.mxu0 0.0
    %1178 = vmatmul.mubr.f32.gmra.mrb[0].mxu0 %v1111
    %v1179 = vpop.f32.mrb[0].mxu0
    %v1180 = vadd.f32 0.0, %v1179
    %v1181 = vpop.f32.mrb[0].mxu0
    %1182 = vdwg.mxu0
    %v1184 = vrot.slane %v1180, 2
    %v1186 = vadd.f32 %v872, %v1184
    %v1187 = vtanh.pop %v1186
    %v1189 = vrot.slane %v1187, 6
    %v1190 = vsel %vm38, %v1189, 0
    %1192 = vmatprep.subr.mxu0 0.0
    %1193 = vmatpush1.msra.mxu0 %v787
    %1194 = vmatprep.subr.mxu0 0.0
    %1195 = vmatpush1.msra.mxu0 %v788
    %1196 = vmatprep.subr.mxu0 0.0
    %1197 = vmatpush1.msra.mxu0 %v789
    %1198 = vmatprep.subr.mxu0 0.0
    %1199 = vmatpush1.msra.mxu0 %v790
    %1200 = vmatprep.subr.mxu0 0.0
    %1201 = vmatpush1.msra.mxu0 0.0
    %1202 = vmatprep.subr.mxu0 0.0
    %1203 = vmatpush1.msra.mxu0 0.0
    %1204 = vmatprep.subr.mxu0 0.0
    %1205 = vmatpush1.msra.mxu0 0.0
    %1206 = vmatprep.subr.mxu0 0.0
    %1207 = vmatpush1.msra.mxu0 0.0
    %1208 = vmatprep.subr.mxu0 0.0
    %1209 = vmatpush1.msra.mxu0 0.0
    %1210 = vmatprep.subr.mxu0 0.0
    %1211 = vmatpush1.msra.mxu0 0.0
    %1212 = vmatprep.subr.mxu0 0.0
    %1213 = vmatpush1.msra.mxu0 0.0
    %1214 = vmatprep.subr.mxu0 0.0
    %1215 = vmatpush1.msra.mxu0 0.0
    %1216 = vmatprep.subr.mxu0 0.0
    %1217 = vmatpush1.msra.mxu0 0.0
    %1218 = vmatprep.subr.mxu0 0.0
    %1219 = vmatpush1.msra.mxu0 0.0
    %1220 = vmatprep.subr.mxu0 0.0
    %1221 = vmatpush1.msra.mxu0 0.0
    %1222 = vmatprep.subr.mxu0 0.0
    %1223 = vmatpush1.msra.mxu0 0.0
    %1224 = vmatprep.subr.mxu0 0.0
    %1225 = vmatpush1.msra.mxu0 0.0
    %1226 = vmatprep.subr.mxu0 0.0
    %1227 = vmatpush1.msra.mxu0 0.0
    %1228 = vmatprep.subr.mxu0 0.0
    %1229 = vmatpush1.msra.mxu0 0.0
    %1230 = vmatprep.subr.mxu0 0.0
    %1231 = vmatpush1.msra.mxu0 0.0
    %1232 = vmatprep.subr.mxu0 0.0
    %1233 = vmatpush1.msra.mxu0 0.0
    %1234 = vmatprep.subr.mxu0 0.0
    %1235 = vmatpush1.msra.mxu0 0.0
    %1236 = vmatprep.subr.mxu0 0.0
    %1237 = vmatpush1.msra.mxu0 0.0
    %1238 = vmatprep.subr.mxu0 0.0
    %1239 = vmatpush1.msra.mxu0 0.0
    %1240 = vmatprep.subr.mxu0 0.0
    %1241 = vmatpush1.msra.mxu0 0.0
    %1242 = vmatprep.subr.mxu0 0.0
    %1243 = vmatpush1.msra.mxu0 0.0
    %1244 = vmatprep.subr.mxu0 0.0
    %1245 = vmatpush1.msra.mxu0 0.0
    %1246 = vmatprep.subr.mxu0 0.0
    %1247 = vmatpush1.msra.mxu0 0.0
    %1248 = vmatprep.subr.mxu0 0.0
    %1249 = vmatpush1.msra.mxu0 0.0
    %1250 = vmatprep.subr.mxu0 0.0
    %1251 = vmatpush1.msra.mxu0 0.0
    %1252 = vmatprep.subr.mxu0 0.0
    %1253 = vmatpush1.msra.mxu0 0.0
    %1254 = vmatprep.subr.mxu0 0.0
    %1255 = vmatpush1.msra.mxu0 0.0
    %1256 = vmatprep.mubr.f32.mxu0 0.0
    %1257 = vmatmul.mubr.f32.gmra.mrb[0].mxu0 %v1190
    %v1258 = vpop.f32.mrb[0].mxu0
    %v1259 = vadd.f32 0.0, %v1258
    %v1260 = vpop.f32.mrb[0].mxu0
    %1261 = vdwg.mxu0
    %v1262 = vadd.f32 %v877, %v1259
    %v1263 = vtanh.pop %v1262
    %v1265 = vsel %vm38, %v1263, 0
    %1267 = vmatprep.subr.mxu0 0.0
    %1268 = vmatpush1.msra.mxu0 %v787
    %1269 = vmatprep.subr.mxu0 0.0
    %1270 = vmatpush1.msra.mxu0 %v788
    %1271 = vmatprep.subr.mxu0 0.0
    %1272 = vmatpush1.msra.mxu0 %v789
    %1273 = vmatprep.subr.mxu0 0.0
    %1274 = vmatpush1.msra.mxu0 %v790
    %1275 = vmatprep.subr.mxu0 0.0
    %1276 = vmatpush1.msra.mxu0 0.0
    %1277 = vmatprep.subr.mxu0 0.0
    %1278 = vmatpush1.msra.mxu0 0.0
    %1279 = vmatprep.subr.mxu0 0.0
    %1280 = vmatpush1.msra.mxu0 0.0
    %1281 = vmatprep.subr.mxu0 0.0
    %1282 = vmatpush1.msra.mxu0 0.0
    %1283 = vmatprep.subr.mxu0 0.0
    %1284 = vmatpush1.msra.mxu0 0.0
    %1285 = vmatprep.subr.mxu0 0.0
    %1286 = vmatpush1.msra.mxu0 0.0
    %1287 = vmatprep.subr.mxu0 0.0
    %1288 = vmatpush1.msra.mxu0 0.0
    %1289 = vmatprep.subr.mxu0 0.0
    %1290 = vmatpush1.msra.mxu0 0.0
    %1291 = vmatprep.subr.mxu0 0.0
    %1292 = vmatpush1.msra.mxu0 0.0
    %1293 = vmatprep.subr.mxu0 0.0
    %1294 = vmatpush1.msra.mxu0 0.0
    %1295 = vmatprep.subr.mxu0 0.0
    %1296 = vmatpush1.msra.mxu0 0.0
    %1297 = vmatprep.subr.mxu0 0.0
    %1298 = vmatpush1.msra.mxu0 0.0
    %1299 = vmatprep.subr.mxu0 0.0
    %1300 = vmatpush1.msra.mxu0 0.0
    %1301 = vmatprep.subr.mxu0 0.0
    %1302 = vmatpush1.msra.mxu0 0.0
    %1303 = vmatprep.subr.mxu0 0.0
    %1304 = vmatpush1.msra.mxu0 0.0
    %1305 = vmatprep.subr.mxu0 0.0
    %1306 = vmatpush1.msra.mxu0 0.0
    %1307 = vmatprep.subr.mxu0 0.0
    %1308 = vmatpush1.msra.mxu0 0.0
    %1309 = vmatprep.subr.mxu0 0.0
    %1310 = vmatpush1.msra.mxu0 0.0
    %1311 = vmatprep.subr.mxu0 0.0
    %1312 = vmatpush1.msra.mxu0 0.0
    %1313 = vmatprep.subr.mxu0 0.0
    %1314 = vmatpush1.msra.mxu0 0.0
    %1315 = vmatprep.subr.mxu0 0.0
    %1316 = vmatpush1.msra.mxu0 0.0
    %1317 = vmatprep.subr.mxu0 0.0
    %1318 = vmatpush1.msra.mxu0 0.0
    %1319 = vmatprep.subr.mxu0 0.0
    %1320 = vmatpush1.msra.mxu0 0.0
    %1321 = vmatprep.subr.mxu0 0.0
    %1322 = vmatpush1.msra.mxu0 0.0
    %1323 = vmatprep.subr.mxu0 0.0
    %1324 = vmatpush1.msra.mxu0 0.0
    %1325 = vmatprep.subr.mxu0 0.0
    %1326 = vmatpush1.msra.mxu0 0.0
    %1327 = vmatprep.subr.mxu0 0.0
    %1328 = vmatpush1.msra.mxu0 0.0
    %1329 = vmatprep.subr.mxu0 0.0
    %1330 = vmatpush1.msra.mxu0 0.0
    %1331 = vmatprep.mubr.f32.mxu0 0.0
    %1332 = vmatmul.mubr.f32.gmra.mrb[0].mxu0 %v1265
    %v1333 = vpop.f32.mrb[0].mxu0
    %v1334 = vadd.f32 0.0, %v1333
    %v1335 = vpop.f32.mrb[0].mxu0
    %1336 = vdwg.mxu0
    %v1338 = vrot.slane %v1334, 6
    %v1340 = vadd.f32 %v877, %v1338
    %v1341 = vtanh.pop %v1340
    %v1343 = vrot.slane %v1341, 2
    %v1344 = vsel %vm38, %v1343, 0
    %1346 = vmatprep.subr.mxu0 0.0
    %1347 = vmatpush1.msra.mxu0 %v787
    %1348 = vmatprep.subr.mxu0 0.0
    %1349 = vmatpush1.msra.mxu0 %v788
    %1350 = vmatprep.subr.mxu0 0.0
    %1351 = vmatpush1.msra.mxu0 %v789
    %1352 = vmatprep.subr.mxu0 0.0
    %1353 = vmatpush1.msra.mxu0 %v790
    %1354 = vmatprep.subr.mxu0 0.0
    %1355 = vmatpush1.msra.mxu0 0.0
    %1356 = vmatprep.subr.mxu0 0.0
    %1357 = vmatpush1.msra.mxu0 0.0
    %1358 = vmatprep.subr.mxu0 0.0
    %1359 = vmatpush1.msra.mxu0 0.0
    %1360 = vmatprep.subr.mxu0 0.0
    %1361 = vmatpush1.msra.mxu0 0.0
    %1362 = vmatprep.subr.mxu0 0.0
    %1363 = vmatpush1.msra.mxu0 0.0
    %1364 = vmatprep.subr.mxu0 0.0
    %1365 = vmatpush1.msra.mxu0 0.0
    %1366 = vmatprep.subr.mxu0 0.0
    %1367 = vmatpush1.msra.mxu0 0.0
    %1368 = vmatprep.subr.mxu0 0.0
    %1369 = vmatpush1.msra.mxu0 0.0
    %1370 = vmatprep.subr.mxu0 0.0
    %1371 = vmatpush1.msra.mxu0 0.0
    %1372 = vmatprep.subr.mxu0 0.0
    %1373 = vmatpush1.msra.mxu0 0.0
    %1374 = vmatprep.subr.mxu0 0.0
    %1375 = vmatpush1.msra.mxu0 0.0
    %1376 = vmatprep.subr.mxu0 0.0
    %1377 = vmatpush1.msra.mxu0 0.0
    %1378 = vmatprep.subr.mxu0 0.0
    %1379 = vmatpush1.msra.mxu0 0.0
    %1380 = vmatprep.subr.mxu0 0.0
    %1381 = vmatpush1.msra.mxu0 0.0
    %1382 = vmatprep.subr.mxu0 0.0
    %1383 = vmatpush1.msra.mxu0 0.0
    %1384 = vmatprep.subr.mxu0 0.0
    %1385 = vmatpush1.msra.mxu0 0.0
    %1386 = vmatprep.subr.mxu0 0.0
    %1387 = vmatpush1.msra.mxu0 0.0
    %1388 = vmatprep.subr.mxu0 0.0
    %1389 = vmatpush1.msra.mxu0 0.0
    %1390 = vmatprep.subr.mxu0 0.0
    %1391 = vmatpush1.msra.mxu0 0.0
    %1392 = vmatprep.subr.mxu0 0.0
    %1393 = vmatpush1.msra.mxu0 0.0
    %1394 = vmatprep.subr.mxu0 0.0
    %1395 = vmatpush1.msra.mxu0 0.0
    %1396 = vmatprep.subr.mxu0 0.0
    %1397 = vmatpush1.msra.mxu0 0.0
    %1398 = vmatprep.subr.mxu0 0.0
    %1399 = vmatpush1.msra.mxu0 0.0
    %1400 = vmatprep.subr.mxu0 0.0
    %1401 = vmatpush1.msra.mxu0 0.0
    %1402 = vmatprep.subr.mxu0 0.0
    %1403 = vmatpush1.msra.mxu0 0.0
    %1404 = vmatprep.subr.mxu0 0.0
    %1405 = vmatpush1.msra.mxu0 0.0
    %1406 = vmatprep.subr.mxu0 0.0
    %1407 = vmatpush1.msra.mxu0 0.0
    %1408 = vmatprep.subr.mxu0 0.0
    %1409 = vmatpush1.msra.mxu0 0.0
    %1410 = vmatprep.mubr.f32.mxu0 0.0
    %1411 = vmatmul.mubr.f32.gmra.mrb[0].mxu0 %v1344
    %v1412 = vpop.f32.mrb[0].mxu0
    %v1413 = vadd.f32 0.0, %v1412
    %v1414 = vpop.f32.mrb[0].mxu0
    %1415 = vdwg.mxu0
    %v1417 = vrot.slane %v1413, 4
    %v1419 = vadd.f32 %v877, %v1417
    %v1420 = vtanh.pop %v1419
    %v1422 = vrot.slane %v1420, 4
    %v1423 = vsel %vm38, %v1422, 0
    %1425 = vmatprep.subr.mxu0 0.0
    %1426 = vmatpush1.msra.mxu0 %v787
    %1427 = vmatprep.subr.mxu0 0.0
    %1428 = vmatpush1.msra.mxu0 %v788
    %1429 = vmatprep.subr.mxu0 0.0
    %1430 = vmatpush1.msra.mxu0 %v789
    %1431 = vmatprep.subr.mxu0 0.0
    %1432 = vmatpush1.msra.mxu0 %v790
    %1433 = vmatprep.subr.mxu0 0.0
    %1434 = vmatpush1.msra.mxu0 0.0
    %1435 = vmatprep.subr.mxu0 0.0
    %1436 = vmatpush1.msra.mxu0 0.0
    %1437 = vmatprep.subr.mxu0 0.0
    %1438 = vmatpush1.msra.mxu0 0.0
    %1439 = vmatprep.subr.mxu0 0.0
    %1440 = vmatpush1.msra.mxu0 0.0
    %1441 = vmatprep.subr.mxu0 0.0
    %1442 = vmatpush1.msra.mxu0 0.0
    %1443 = vmatprep.subr.mxu0 0.0
    %1444 = vmatpush1.msra.mxu0 0.0
    %1445 = vmatprep.subr.mxu0 0.0
    %1446 = vmatpush1.msra.mxu0 0.0
    %1447 = vmatprep.subr.mxu0 0.0
    %1448 = vmatpush1.msra.mxu0 0.0
    %1449 = vmatprep.subr.mxu0 0.0
    %1450 = vmatpush1.msra.mxu0 0.0
    %1451 = vmatprep.subr.mxu0 0.0
    %1452 = vmatpush1.msra.mxu0 0.0
    %1453 = vmatprep.subr.mxu0 0.0
    %1454 = vmatpush1.msra.mxu0 0.0
    %1455 = vmatprep.subr.mxu0 0.0
    %1456 = vmatpush1.msra.mxu0 0.0
    %1457 = vmatprep.subr.mxu0 0.0
    %1458 = vmatpush1.msra.mxu0 0.0
    %1459 = vmatprep.subr.mxu0 0.0
    %1460 = vmatpush1.msra.mxu0 0.0
    %1461 = vmatprep.subr.mxu0 0.0
    %1462 = vmatpush1.msra.mxu0 0.0
    %1463 = vmatprep.subr.mxu0 0.0
    %1464 = vmatpush1.msra.mxu0 0.0
    %1465 = vmatprep.subr.mxu0 0.0
    %1466 = vmatpush1.msra.mxu0 0.0
    %1467 = vmatprep.subr.mxu0 0.0
    %1468 = vmatpush1.msra.mxu0 0.0
    %1469 = vmatprep.subr.mxu0 0.0
    %1470 = vmatpush1.msra.mxu0 0.0
    %1471 = vmatprep.subr.mxu0 0.0
    %1472 = vmatpush1.msra.mxu0 0.0
    %1473 = vmatprep.subr.mxu0 0.0
    %1474 = vmatpush1.msra.mxu0 0.0
    %1475 = vmatprep.subr.mxu0 0.0
    %1476 = vmatpush1.msra.mxu0 0.0
    %1477 = vmatprep.subr.mxu0 0.0
    %1478 = vmatpush1.msra.mxu0 0.0
    %1479 = vmatprep.subr.mxu0 0.0
    %1480 = vmatpush1.msra.mxu0 0.0
    %1481 = vmatprep.subr.mxu0 0.0
    %1482 = vmatpush1.msra.mxu0 0.0
    %1483 = vmatprep.subr.mxu0 0.0
    %1484 = vmatpush1.msra.mxu0 0.0
    %1485 = vmatprep.subr.mxu0 0.0
    %1486 = vmatpush1.msra.mxu0 0.0
    %1487 = vmatprep.subr.mxu0 0.0
    %1488 = vmatpush1.msra.mxu0 0.0
    %1489 = vmatprep.mubr.f32.mxu0 0.0
    %1490 = vmatmul.mubr.f32.gmra.mrb[0].mxu0 %v1423
    %v1491 = vpop.f32.mrb[0].mxu0
    %v1492 = vadd.f32 0.0, %v1491
    %v1493 = vpop.f32.mrb[0].mxu0
    %1494 = vdwg.mxu0
    %v1496 = vrot.slane %v1492, 2
    %v1498 = vadd.f32 %v877, %v1496
    %v1499 = vtanh.pop %v1498
    %v1500 = vsel %vm772, %v951, %v1029
    %v1501 = vsel %vm774, %v1500, %v1108
    %v1502 = vsel %vm776, %v1501, %v1187
    %v1503 = vsel %vm772, %v1263, %v1341
    %v1504 = vsel %vm774, %v1503, %v1420
    %v1505 = vsel %vm776, %v1504, %v1499
    %v1508 = vrot.slane %v1502, 6
    %v1509 = vrot.slane %v1505, 6
    %v1510 = vsel %vm772, %v1508, %v1509
    %v1513 = vsel %vm772, 0.0, %v1508
    %v1514 = vrot.slane %v1502, 2
    %v1515 = vrot.slane %v1505, 2
    %v1516 = vsel %vm776, %v1514, %v1515
    %v1518 = vsel %vm776, %v1515, 0.0
    %1519 = vrot.lane.b32.xlu0 %v1502, 32
    %v1520 = vpop.permute.xlu0 %1519
    %1521 = vrot.lane.b32.xlu0 %v1505, 32
    %v1522 = vpop.permute.xlu0 %1521
    %1526 = vrot.lane.b32.xlu0 %v1516, 64
    %v1527 = vpop.permute.xlu0 %1526
    %1528 = vrot.lane.b32.xlu0 %v1518, 64
    %v1529 = vpop.permute.xlu0 %1528
    %v1532 = vsel %vm38, %v1513, %v1520
    %v1533 = vsel %vm38, %v1510, %v1522
    %vm1534 = vcmask 523264
    %v1535 = vsel %vm1534, %v1532, %v1527
    %v1536 = vsel %vm1534, %v1533, %v1529
    %v1537 = vld [vmem:[%s4] sm:$0xff]
    %v1538 = vld [vmem:[%s4 + $0x8] sm:$0xff]
    %v1539 = vld [vmem:[%s4 + $0x10] sm:$0xff]
    %v1540 = vld [vmem:[%s4 + $0x18] sm:$0xff]
    %v1541 = vld [vmem:[%s4 + $0x20] sm:$0xff]
    %v1542 = vld [vmem:[%s4 + $0x28] sm:$0xff]
    %v1543 = vld [vmem:[%s4 + $0x30] sm:$0xff]
    %v1544 = vld [vmem:[%s4 + $0x38] sm:$0xff]
    %v1545 = vld [vmem:[%s4 + $0x40] sm:$0xff]
    %v1546 = vld [vmem:[%s4 + $0x48] sm:$0xff]
    %v1547 = vld [vmem:[%s4 + $0x50] sm:$0xff]
    %v1548 = vld [vmem:[%s4 + $0x58] sm:$0xff]
    %vm1549 = vcmask 785408
    %v1551 = vsel %vm1549, %v1535, 0
    %v1554 = vsel %vm1549, %v1536, 0
    %1556 = vmatprep.subr.mxu0 0.0
    %1557 = vmatpush1.msra.mxu0 %v1537
    %1558 = vmatprep.subr.mxu0 0.0
    %1559 = vmatpush1.msra.mxu0 %v1538
    %1560 = vmatprep.subr.mxu0 0.0
    %1561 = vmatpush1.msra.mxu0 %v1539
    %1562 = vmatprep.subr.mxu0 0.0
    %1563 = vmatpush1.msra.mxu0 %v1540
    %1564 = vmatprep.subr.mxu0 0.0
    %1565 = vmatpush1.msra.mxu0 %v1541
    %1566 = vmatprep.subr.mxu0 0.0
    %1567 = vmatpush1.msra.mxu0 %v1542
    %1568 = vmatprep.subr.mxu0 0.0
    %1569 = vmatpush1.msra.mxu0 %v1543
    %1570 = vmatprep.subr.mxu0 0.0
    %1571 = vmatpush1.msra.mxu0 %v1544
    %1572 = vmatprep.subr.mxu0 0.0
    %1573 = vmatpush1.msra.mxu0 %v1545
    %1574 = vmatprep.subr.mxu0 0.0
    %1575 = vmatpush1.msra.mxu0 %v1546
    %1576 = vmatprep.subr.mxu0 0.0
    %1577 = vmatpush1.msra.mxu0 %v1547
    %1578 = vmatprep.subr.mxu0 0.0
    %1579 = vmatpush1.msra.mxu0 %v1548
    %1580 = vmatprep.subr.mxu0 0.0
    %1581 = vmatpush1.msra.mxu0 0.0
    %1582 = vmatprep.subr.mxu0 0.0
    %1583 = vmatpush1.msra.mxu0 0.0
    %1584 = vmatprep.subr.mxu0 0.0
    %1585 = vmatpush1.msra.mxu0 0.0
    %1586 = vmatprep.subr.mxu0 0.0
    %1587 = vmatpush1.msra.mxu0 0.0
    %1588 = vmatprep.subr.mxu0 0.0
    %1589 = vmatpush1.msra.mxu0 0.0
    %1590 = vmatprep.subr.mxu0 0.0
    %1591 = vmatpush1.msra.mxu0 0.0
    %1592 = vmatprep.subr.mxu0 0.0
    %1593 = vmatpush1.msra.mxu0 0.0
    %1594 = vmatprep.subr.mxu0 0.0
    %1595 = vmatpush1.msra.mxu0 0.0
    %1596 = vmatprep.subr.mxu0 0.0
    %1597 = vmatpush1.msra.mxu0 0.0
    %1598 = vmatprep.subr.mxu0 0.0
    %1599 = vmatpush1.msra.mxu0 0.0
    %1600 = vmatprep.subr.mxu0 0.0
    %1601 = vmatpush1.msra.mxu0 0.0
    %1602 = vmatprep.subr.mxu0 0.0
    %1603 = vmatpush1.msra.mxu0 0.0
    %1604 = vmatprep.subr.mxu0 0.0
    %1605 = vmatpush1.msra.mxu0 0.0
    %1606 = vmatprep.subr.mxu0 0.0
    %1607 = vmatpush1.msra.mxu0 0.0
    %1608 = vmatprep.subr.mxu0 0.0
    %1609 = vmatpush1.msra.mxu0 0.0
    %1610 = vmatprep.subr.mxu0 0.0
    %1611 = vmatpush1.msra.mxu0 0.0
    %1612 = vmatprep.subr.mxu0 0.0
    %1613 = vmatpush1.msra.mxu0 0.0
    %1614 = vmatprep.subr.mxu0 0.0
    %1615 = vmatpush1.msra.mxu0 0.0
    %1616 = vmatprep.subr.mxu0 0.0
    %1617 = vmatpush1.msra.mxu0 0.0
    %1618 = vmatprep.subr.mxu0 0.0
    %1619 = vmatpush1.msra.mxu0 0.0
    %1620 = vmatprep.mubr.f32.mxu0 0.0
    %1621 = vmatmul.mubr.f32.gmra.mrb[0].mxu0 %v1551
    %v1622 = vpop.f32.mrb[0].mxu0
    %v1623 = vadd.f32 0.0, %v1622
    %v1624 = vpop.f32.mrb[0].mxu0
    %1625 = vmatprep.mubr.f32.mxu0 0.0
    %1626 = vmatmul.mubr.f32.gmra.mrb[0].mxu0 %v1554
    %v1627 = vpop.f32.mrb[0].mxu0
    %v1628 = vadd.f32 0.0, %v1627
    %v1629 = vpop.f32.mrb[0].mxu0
    %1630 = vdwg.mxu0
    %v1631 = vxor.u32 %v1623, 2147483648
    %v1632 = vxor.u32 %v1628, 2147483648
    %v1633 = vmul.f32 %v1631, 1.442695
    %v1634 = vpow.pop %v1633
    %v1635 = vmul.f32 %v1632, 1.442695
    %v1636 = vpow.pop %v1635
    %v1637 = vadd.f32 %v1634, 1.0
    %v1638 = vadd.f32 %v1636, 1.0
    %v1639 = vrcp.pop %v1637
    %v1640 = vmul.f32 1.0, %v1639
    %v1641 = vrcp.pop %v1638
    %v1642 = vmul.f32 1.0, %v1641
    %1645 = vrot.lane.b32.xlu0 %v1640, 96
    %v1646 = vpop.permute.xlu0 %1645
    %1647 = vrot.lane.b32.xlu0 %v1642, 96
    %v1648 = vpop.permute.xlu0 %1647
    %v1651 = vmul.f32 %v1623, %v1646
    %v1652 = vmul.f32 %v1628, %v1648
    %v1654 = vrot.slane %v1651, 1
    %v1656 = vrot.slane %v1651, 2
    %v1658 = vrot.slane %v1651, 3
    %v1661 = vrot.slane %v1652, 4
    %v1663 = vrot.slane %v1652, 5
    %v1665 = vrot.slane %v1652, 6
    %v1667 = vrot.slane %v1652, 7
    %v1669 = vsel %vm123, %v1651, %v1654
    %v1670 = vsel %vm772, %v1669, %v1656
    %vm1671 = vcmask 1042432
    %v1672 = vsel %vm1671, %v1670, %v1658
    %v1673 = vsel %vm774, %v1672, %v1661
    %vm1674 = vcmask 1044480
    %v1675 = vsel %vm1674, %v1673, %v1663
    %v1676 = vsel %vm776, %v1675, %v1665
    %vm1677 = vcmask 1046528
    %v1678 = vsel %vm1677, %v1676, %v1667
    %1679 = vst.msk [vmem:[#allocation2] sm:$0xff] %vm38, %v1678
    %v1680 = vrot.slane %v1651, 4
    %v1682 = vsel %vm123, %v1654, %v1656
    %v1683 = vsel %vm772, %v1682, %v1658
    %v1684 = vsel %vm1671, %v1683, %v1680
    %v1685 = vsel %vm774, %v1684, %v1663
    %v1686 = vsel %vm1674, %v1685, %v1665
    %v1687 = vsel %vm776, %v1686, %v1667
    %v1688 = vsel %vm1677, %v1687, %v1652
    %s1689 = scalar_lea.vmem [#allocation2], 8
    %1690 = vst.msk [vmem:[%s1689] sm:$0xff] %vm38, %v1688
    // Predicated region
    $region22: #{rcnn_forward.1} parent=1 // pred_check
      _
    $region23: #{rcnn_forward.1} parent=1 // pred_check_branch
      %1692 = sbr.rel (0) target = $region25
    $region24: #{rcnn_forward.1} parent=1 // pred_region
      %s1694 = ssub.s32 256, 256
      %1695 = vsyncadd [#allocation3], %s1694
      %s1696 = sshll.u32 [#allocation2], 4
      %s1697 = int_to_ptr.vmem [resolvable:$true] %s1696
      %1702 = dma.vmem_to_hbm [thread:$0]  %s1697, 256, %s5, [#allocation3], 128, 128, 8
    $region25: #{rcnn_forward.1} parent=1 // pred_fallthru
      _
    // Predicated region
    $region26: #{rcnn_forward.1} parent=1 // pred_check
      _
    $region27: #{rcnn_forward.1} parent=1 // pred_check_branch
      %1704 = sbr.rel (0) target = $region29
    $region28: #{rcnn_forward.1} parent=1 // pred_region
      %1705 = dma.done [#allocation3], 256
    $region29: #{rcnn_forward.1} parent=1 // pred_fallthru
      _
    %1706 = vsyncpa [#allocation3], 1

</llo_original>
